<compile_context>
chip_gen: v6e
topology: v6e:2x2x1
jax: 0.10.0
libtpu: 0.0.40
codegen_flags: <defaults>
</compile_context>

<pallas_src>
import math
import functools

import jax
import jax.numpy as jnp
from jax.experimental import pallas as pl
from jax.experimental.pallas import tpu as pltpu


# ---------------------------------------------------------------------------
# Generation-aware knobs
# ---------------------------------------------------------------------------
def _vmem_capacity_bytes():
    """Physical VMEM of the attached TPU (128 MiB v5e/v6e, 64 MiB v7x)."""
    try:
        return int(pltpu.get_tpu_info().vmem_capacity_bytes)
    except Exception:
        return 64 * 1024 * 1024  # conservative (v7x) fallback


def _vmem_limit_bytes():
    # ~108 MiB on 128-MiB parts (v5e/v6e), ~54 MiB on 64-MiB v7x.
    return min(int(_vmem_capacity_bytes() * 0.85), 112 * 1024 * 1024)


def _linear_tile_defaults():
    if _vmem_capacity_bytes() >= 96 * 1024 * 1024:  # v5e / v6e (128 MiB VMEM)
        return 1024, 512, 1024                      # tm, tn, tk
    return 512, 512, 1024                           # v7x (64 MiB VMEM)


def _sublane_quantum(dtype):
    """Sub-32-bit dtypes pack along sublanes: 8 rows f32, 16 bf16, 32 int8."""
    return 8 * max(1, 4 // jnp.dtype(dtype).itemsize)


def _pick_tile(dim, target, quantum):
    """Largest tile <= target that divides `dim` and is a multiple of `quantum`.
    Falls back to the full dim (always legal for BlockSpec)."""
    if dim <= target:
        return dim
    t = (target // quantum) * quantum
    while t >= quantum:
        if dim % t == 0:
            return t
        t -= quantum
    return dim


# ---------------------------------------------------------------------------
# K-tiled linear:  out = x @ wT + b   (wT already in MXU-native (K, N) layout)
# ---------------------------------------------------------------------------
def _linear_kernel(x_ref, w_ref, b_ref, o_ref, acc_ref):
    k = pl.program_id(2)

    @pl.when(k == 0)
    def _():
        acc_ref[...] = jnp.zeros_like(acc_ref)

    acc_ref[...] += jnp.dot(x_ref[...], w_ref[...],
                            preferred_element_type=jnp.float32)

    @pl.when(k == pl.num_programs(2) - 1)
    def _():
        o_ref[...] = (acc_ref[...] + b_ref[...].astype(jnp.float32)
                      ).astype(o_ref.dtype)


def linear(x2d, wT, b2d, *, tm=None, tn=None, tk=None):
    """x2d: (M, K); wT: (K, N); b2d: (1, N)  ->  (M, N)."""
    M, K = x2d.shape
    N = wT.shape[1]
    dtm, dtn, dtk = _linear_tile_defaults()
    tm = _pick_tile(M, tm or dtm, _sublane_quantum(x2d.dtype))
    tn = _pick_tile(N, tn or dtn, 128)   # lane dim of out — keep lane-dense
    tk = _pick_tile(K, tk or dtk, 128)   # lane dim of x / sublane dim of wT

    return pl.pallas_call(
        _linear_kernel,
        out_shape=jax.ShapeDtypeStruct((M, N), x2d.dtype),
        grid=(M // tm, N // tn, K // tk),
        in_specs=[
            pl.BlockSpec((tm, tk), lambda i, j, k: (i, k)),
            pl.BlockSpec((tk, tn), lambda i, j, k: (k, j)),
            pl.BlockSpec((1, tn), lambda i, j, k: (0, j)),
        ],
        out_specs=pl.BlockSpec((tm, tn), lambda i, j, k: (i, j)),
        scratch_shapes=[pltpu.VMEM((tm, tn), jnp.float32)],
        compiler_params=pltpu.CompilerParams(
            dimension_semantics=("parallel", "parallel", "arbitrary"),
            vmem_limit_bytes=_vmem_limit_bytes()),
    )(x2d, wT, b2d)


# ---------------------------------------------------------------------------
# Flash-style (non-causal, matching the reference) attention over (B, H, T, hd)
# with h_block heads processed per grid step.
# ---------------------------------------------------------------------------
def _flash_kernel(q_ref, k_ref, v_ref, o_ref, m_sc, l_sc, acc_sc):
    ikv = pl.program_id(3)

    @pl.when(ikv == 0)
    def _():
        m_sc[...] = jnp.full_like(m_sc, -jnp.inf)
        l_sc[...] = jnp.zeros_like(l_sc)
        acc_sc[...] = jnp.zeros_like(acc_sc)

    q = q_ref[0]                                   # (Hblk, tq, hd), native dtype
    k = k_ref[0]                                   # (Hblk, tkv, hd)
    # Batched QK^T, contracting hd (scale already folded into the Q weights).
    s = jax.lax.dot_general(
        q, k,
        dimension_numbers=(((2,), (2,)), ((0,), (0,))),
        preferred_element_type=jnp.float32)        # (Hblk, tq, tkv) f32

    m_prev = m_sc[...]
    m_new = jnp.maximum(m_prev, jnp.max(s, axis=-1, keepdims=True))
    alpha = jnp.exp(m_prev - m_new)
    p = jnp.exp(s - m_new)                         # (Hblk, tq, tkv) f32
    l_sc[...] = alpha * l_sc[...] + jnp.sum(p, axis=-1, keepdims=True)
    acc_sc[...] = alpha * acc_sc[...] + jax.lax.dot_general(
        p.astype(v_ref.dtype), v_ref[0],
        dimension_numbers=(((2,), (1,)), ((0,), (0,))),
        preferred_element_type=jnp.float32)        # (Hblk, tq, hd) f32
    m_sc[...] = m_new

    @pl.when(ikv == pl.num_programs(3) - 1)
    def _():
        inv_l = pl.reciprocal(l_sc[...], approx=False)   # EUP; exact
        o_ref[0] = (acc_sc[...] * inv_l).astype(o_ref.dtype)


def flash_attention(q, k, v, *, tq=512, tkv=128, h_block=None):
    """q, k, v: (B, H, T, hd) -> (B, H, T, hd). Non-causal softmax(qk^T) v,
    with the 1/sqrt(hd) scale assumed pre-folded into q."""
    B, H, T, hd = q.shape
    tq = _pick_tile(T, tq, _sublane_quantum(q.dtype))
    tkv = _pick_tile(T, tkv, _sublane_quantum(k.dtype))

    if h_block is None:
        # Batch heads per grid step so h_block*hd ~ 128 (MXU width / overhead),
        # but keep the f32 (h_block, tq, tkv) score tile modest (vreg/VMEM,
        # especially on v5e).
        h_block = max(1, min(H, 128 // max(hd, 1)))
        while h_block > 1 and h_block * tq * tkv * 4 > 512 * 1024:
            h_block -= 1
    h_block = max(1, min(h_block, H))
    while H % h_block:
        h_block -= 1

    return pl.pallas_call(
        _flash_kernel,
        out_shape=jax.ShapeDtypeStruct((B, H, T, hd), q.dtype),
        grid=(B, H // h_block, T // tq, T // tkv),
        in_specs=[
            pl.BlockSpec((1, h_block, tq, hd), lambda b, h, iq, ikv: (b, h, iq, 0)),
            pl.BlockSpec((1, h_block, tkv, hd), lambda b, h, iq, ikv: (b, h, ikv, 0)),
            pl.BlockSpec((1, h_block, tkv, hd), lambda b, h, iq, ikv: (b, h, ikv, 0)),
        ],
        out_specs=pl.BlockSpec((1, h_block, tq, hd),
                               lambda b, h, iq, ikv: (b, h, iq, 0)),
        scratch_shapes=[
            pltpu.VMEM((h_block, tq, 1), jnp.float32),    # running max m
            pltpu.VMEM((h_block, tq, 1), jnp.float32),    # running sum l
            pltpu.VMEM((h_block, tq, hd), jnp.float32),   # output accumulator
        ],
        compiler_params=pltpu.CompilerParams(
            dimension_semantics=("parallel", "parallel", "parallel", "arbitrary"),
            vmem_limit_bytes=_vmem_limit_bytes()),
    )(q, k, v)


# ---------------------------------------------------------------------------
# Full module forward
# ---------------------------------------------------------------------------
def causal_self_attention(x, w_attn, b_attn, w_proj, b_proj, n_head):
    """x: (B, T, C); w_attn: (3C, C) torch layout; w_proj: (C, C) torch layout."""
    B, T, C = x.shape
    hd = C // n_head
    scale = 1.0 / math.sqrt(hd)

    # Fold the 1/sqrt(hd) attention scale into the static Q weights / bias.
    w_attn = w_attn.at[:C, :].multiply(scale)
    b_attn = b_attn.at[:C].multiply(scale)

    # One-time transposes of the static weights to MXU-native (K, N) layout.
    wT_attn = w_attn.T                # (C, 3C)
    wT_proj = w_proj.T                # (C, C)

    x2 = x.reshape(B * T, C)
    qkv = linear(x2, wT_attn, b_attn.reshape(1, 3 * C))          # (B*T, 3C)

    # Single fused head-split transpose (one copy instead of three).
    qkv = qkv.reshape(B, T, 3, n_head, hd)
    qkv = jnp.transpose(qkv, (2, 0, 3, 1, 4))                    # (3, B, H, T, hd)
    q, k, v = qkv[0], qkv[1], qkv[2]

    y = flash_attention(q, k, v)                                 # (B, H, T, hd)
    y2 = jnp.transpose(y, (0, 2, 1, 3)).reshape(B * T, C)        # (B*T, C)

    out = linear(y2, wT_proj, b_proj.reshape(1, C))              # (B*T, C)
    return out.reshape(B, T, C)


def reference(x, w_attn, b_attn, w_proj, b_proj, n_head):
    """Pure-JAX reference mirroring the PyTorch forward (no causal mask)."""
    B, T, C = x.shape
    hd = C // n_head
    qkv = jnp.einsum('btc,dc->btd', x, w_attn) + b_attn          # (B, T, 3C)
    q, k, v = jnp.split(qkv, 3, axis=2)

    def heads(a):
        return jnp.transpose(a.reshape(B, T, n_head, hd), (0, 2, 1, 3))

    q, k, v = heads(q), heads(k), heads(v)
    s = jnp.einsum('bhqd,bhkd->bhqk', q, k) / math.sqrt(hd)
    p = jax.nn.softmax(s, axis=-1)
    y = jnp.einsum('bhqk,bhkd->bhqd', p, v)
    y = jnp.transpose(y, (0, 2, 1, 3)).reshape(B, T, C)
    return jnp.einsum('btc,dc->btd', y, w_proj) + b_proj


if __name__ == "__main__":
    # small config consistent with the module: n_embd % n_head == 0
    B, T, C, n_head = 2, 8, 32, 4

    key = jax.random.PRNGKey(0)
    kx, k1, k2, k3, k4 = jax.random.split(key, 5)

    x = jax.random.normal(kx, (B, T, C), dtype=jnp.float32)

    # deterministic parameter init (uniform, like nn.Linear's kaiming-uniform bound)
    bound = 1.0 / math.sqrt(C)
    w_attn = jax.random.uniform(k1, (3 * C, C), jnp.float32, -bound, bound)
    b_attn = jax.random.uniform(k2, (3 * C,), jnp.float32, -bound, bound)
    w_proj = jax.random.uniform(k3, (C, C), jnp.float32, -bound, bound)
    b_proj = jax.random.uniform(k4, (C,), jnp.float32, -bound, bound)

    fwd = jax.jit(causal_self_attention, static_argnums=5)
    out = jax.block_until_ready(fwd(x, w_attn, b_attn, w_proj, b_proj, n_head))

    ref = reference(x, w_attn, b_attn, w_proj, b_proj, n_head)
    assert out.shape == (B, T, C)
    assert jnp.allclose(out, ref, atol=2e-3, rtol=2e-3), "mismatch vs JAX reference"

    print("KERNEL_OK")
</pallas_src>

<mosaic_0001>
module attributes {stable_mosaic.version = 11 : i64} {
  func.func @_linear_kernel(%arg0: i32, %arg1: i32, %arg2: i32, %arg3: memref<16x32xf32, #tpu.memory_space<vmem>>, %arg4: memref<32x96xf32, #tpu.memory_space<vmem>>, %arg5: memref<1x96xf32, #tpu.memory_space<vmem>>, %arg6: memref<16x96xf32, #tpu.memory_space<vmem>>, %arg7: memref<16x96xf32, #tpu.memory_space<vmem>>) attributes {dimension_semantics = [#tpu.dimension_semantics<parallel>, #tpu.dimension_semantics<parallel>, #tpu.dimension_semantics<arbitrary>], iteration_bounds = array<i64: 1, 1, 1>, scalar_prefetch = 0 : i64, scratch_operands = 1 : i64, tpu.core_type = #tpu.core_type<tc>, window_params = [{transform_indices = @transform_0, window_bounds = array<i64: 16, 32>}, {transform_indices = @transform_1, window_bounds = array<i64: 32, 96>}, {transform_indices = @transform_2, window_bounds = array<i64: 1, 96>}, {transform_indices = @transform_3, window_bounds = array<i64: 16, 96>}]} {
    %c0_i32 = arith.constant 0 : i32
    %0 = arith.cmpi eq, %arg2, %c0_i32 : i32
    %1 = arith.extui %0 : i1 to i32
    %c0_i32_0 = arith.constant 0 : i32
    %2 = arith.cmpi ne, %1, %c0_i32_0 : i32
    scf.if %2 {
      %cst_10 = arith.constant 0.000000e+00 : f32
      %12 = vector.broadcast %cst_10 : f32 to vector<16x96xf32>
      %c0_11 = arith.constant 0 : index
      %c0_12 = arith.constant 0 : index
      %13 = vector.load %arg7[%c0_11, %c0_12] : memref<16x96xf32, #tpu.memory_space<vmem>>, vector<16x96xf32>
      tpu.vector_store %arg7[%c0_11, %c0_12], %12 {strides = array<i32>} : memref<16x96xf32, #tpu.memory_space<vmem>>, vector<16x96xf32>,
    } else {
    }
    %c0 = arith.constant 0 : index
    %c0_1 = arith.constant 0 : index
    %3 = vector.load %arg7[%c0, %c0_1] : memref<16x96xf32, #tpu.memory_space<vmem>>, vector<16x96xf32>
    %c0_2 = arith.constant 0 : index
    %c0_3 = arith.constant 0 : index
    %4 = vector.load %arg3[%c0_2, %c0_3] : memref<16x32xf32, #tpu.memory_space<vmem>>, vector<16x32xf32>
    %c0_4 = arith.constant 0 : index
    %c0_5 = arith.constant 0 : index
    %5 = vector.load %arg4[%c0_4, %c0_5] : memref<32x96xf32, #tpu.memory_space<vmem>>, vector<32x96xf32>
    %cst = arith.constant dense<0.000000e+00> : vector<16x96xf32>
    %6 = tpu.matmul %4, %5, %cst {dimension_numbers = #tpu.dot_dimension_numbers<[1], [0], [0], [1], [0, 0, 1, 1], [], []>} : vector<16x32xf32>, vector<32x96xf32>, vector<16x96xf32> -> vector<16x96xf32>
    %7 = arith.addf %3, %6 : vector<16x96xf32>
    %c0_6 = arith.constant 0 : index
    %c0_7 = arith.constant 0 : index
    %8 = vector.load %arg7[%c0_6, %c0_7] : memref<16x96xf32, #tpu.memory_space<vmem>>, vector<16x96xf32>
    tpu.vector_store %arg7[%c0_6, %c0_7], %7 {strides = array<i32>} : memref<16x96xf32, #tpu.memory_space<vmem>>, vector<16x96xf32>,
    %c0_i32_8 = arith.constant 0 : i32
    %9 = arith.cmpi eq, %arg2, %c0_i32_8 : i32
    %10 = arith.extui %9 : i1 to i32
    %c0_i32_9 = arith.constant 0 : i32
    %11 = arith.cmpi ne, %10, %c0_i32_9 : i32
    scf.if %11 {
      %c0_10 = arith.constant 0 : index
      %c0_11 = arith.constant 0 : index
      %12 = vector.load %arg7[%c0_10, %c0_11] : memref<16x96xf32, #tpu.memory_space<vmem>>, vector<16x96xf32>
      %c0_12 = arith.constant 0 : index
      %c0_13 = arith.constant 0 : index
      %13 = vector.load %arg5[%c0_12, %c0_13] : memref<1x96xf32, #tpu.memory_space<vmem>>, vector<1x96xf32>
      %14 = vector.broadcast %13 : vector<1x96xf32> to vector<16x96xf32>
      %15 = arith.addf %12, %14 : vector<16x96xf32>
      %c0_14 = arith.constant 0 : index
      %c0_15 = arith.constant 0 : index
      %16 = vector.load %arg6[%c0_14, %c0_15] : memref<16x96xf32, #tpu.memory_space<vmem>>, vector<16x96xf32>
      tpu.vector_store %arg6[%c0_14, %c0_15], %15 {strides = array<i32>} : memref<16x96xf32, #tpu.memory_space<vmem>>, vector<16x96xf32>,
    } else {
    }
    return
  }
  func.func @transform_0(%arg0: i32, %arg1: i32, %arg2: i32) -> (i32, i32) {
    %c0_i32 = arith.constant 0 : i32
    return %arg0, %arg2 : i32, i32
  }
  func.func @transform_1(%arg0: i32, %arg1: i32, %arg2: i32) -> (i32, i32) {
    %c0_i32 = arith.constant 0 : i32
    return %arg2, %arg1 : i32, i32
  }
  func.func @transform_2(%arg0: i32, %arg1: i32, %arg2: i32) -> (i32, i32) {
    %c0_i32 = arith.constant 0 : i32
    %c0_i32_0 = arith.constant 0 : i32
    return %c0_i32, %arg1 : i32, i32
  }
  func.func @transform_3(%arg0: i32, %arg1: i32, %arg2: i32) -> (i32, i32) {
    %c0_i32 = arith.constant 0 : i32
    return %arg0, %arg1 : i32, i32
  }
}

module attributes {stable_mosaic.version = 11 : i64} {
  func.func @_flash_kernel(%arg0: i32, %arg1: i32, %arg2: i32, %arg3: i32, %arg4: memref<1x4x8x8xf32, #tpu.memory_space<vmem>>, %arg5: memref<1x4x8x8xf32, #tpu.memory_space<vmem>>, %arg6: memref<1x4x8x8xf32, #tpu.memory_space<vmem>>, %arg7: memref<1x4x8x8xf32, #tpu.memory_space<vmem>>, %arg8: memref<4x8x1xf32, #tpu.memory_space<vmem>>, %arg9: memref<4x8x1xf32, #tpu.memory_space<vmem>>, %arg10: memref<4x8x8xf32, #tpu.memory_space<vmem>>) attributes {dimension_semantics = [#tpu.dimension_semantics<parallel>, #tpu.dimension_semantics<parallel>, #tpu.dimension_semantics<parallel>, #tpu.dimension_semantics<arbitrary>], iteration_bounds = array<i64: 2, 1, 1, 1>, scalar_prefetch = 0 : i64, scratch_operands = 3 : i64, tpu.core_type = #tpu.core_type<tc>, window_params = [{transform_indices = @transform_0, window_bounds = array<i64: 1, 4, 8, 8>}, {transform_indices = @transform_1, window_bounds = array<i64: 1, 4, 8, 8>}, {transform_indices = @transform_2, window_bounds = array<i64: 1, 4, 8, 8>}, {transform_indices = @transform_3, window_bounds = array<i64: 1, 4, 8, 8>}]} {
    %c0_i32 = arith.constant 0 : i32
    %0 = arith.cmpi eq, %arg3, %c0_i32 : i32
    %1 = arith.extui %0 : i1 to i32
    %c0_i32_0 = arith.constant 0 : i32
    %2 = arith.cmpi ne, %1, %c0_i32_0 : i32
    scf.if %2 {
      %cst_35 = arith.constant 0xFF800000 : f32
      %35 = vector.broadcast %cst_35 : f32 to vector<4x8x1xf32>
      %c0_36 = arith.constant 0 : index
      %c0_37 = arith.constant 0 : index
      %c0_38 = arith.constant 0 : index
      %36 = vector.load %arg8[%c0_36, %c0_37, %c0_38] : memref<4x8x1xf32, #tpu.memory_space<vmem>>, vector<4x8x1xf32>
      tpu.vector_store %arg8[%c0_36, %c0_37, %c0_38], %35 {strides = array<i32>} : memref<4x8x1xf32, #tpu.memory_space<vmem>>, vector<4x8x1xf32>,
      %cst_39 = arith.constant 0.000000e+00 : f32
      %37 = vector.broadcast %cst_39 : f32 to vector<4x8x1xf32>
      %c0_40 = arith.constant 0 : index
      %c0_41 = arith.constant 0 : index
      %c0_42 = arith.constant 0 : index
      %38 = vector.load %arg9[%c0_40, %c0_41, %c0_42] : memref<4x8x1xf32, #tpu.memory_space<vmem>>, vector<4x8x1xf32>
      tpu.vector_store %arg9[%c0_40, %c0_41, %c0_42], %37 {strides = array<i32>} : memref<4x8x1xf32, #tpu.memory_space<vmem>>, vector<4x8x1xf32>,
      %cst_43 = arith.constant 0.000000e+00 : f32
      %39 = vector.broadcast %cst_43 : f32 to vector<4x8x8xf32>
      %c0_44 = arith.constant 0 : index
      %c0_45 = arith.constant 0 : index
      %c0_46 = arith.constant 0 : index
      %40 = vector.load %arg10[%c0_44, %c0_45, %c0_46] : memref<4x8x8xf32, #tpu.memory_space<vmem>>, vector<4x8x8xf32>
      tpu.vector_store %arg10[%c0_44, %c0_45, %c0_46], %39 {strides = array<i32>} : memref<4x8x8xf32, #tpu.memory_space<vmem>>, vector<4x8x8xf32>,
    } else {
    }
    %c0 = arith.constant 0 : index
    %c0_1 = arith.constant 0 : index
    %c0_2 = arith.constant 0 : index
    %c0_3 = arith.constant 0 : index
    %3 = vector.load %arg4[%c0, %c0_1, %c0_2, %c0_3] : memref<1x4x8x8xf32, #tpu.memory_space<vmem>>, vector<1x4x8x8xf32>
    %4 = vector.shape_cast %3 : vector<1x4x8x8xf32> to vector<4x8x8xf32>
    %c0_4 = arith.constant 0 : index
    %c0_5 = arith.constant 0 : index
    %c0_6 = arith.constant 0 : index
    %c0_7 = arith.constant 0 : index
    %5 = vector.load %arg5[%c0_4, %c0_5, %c0_6, %c0_7] : memref<1x4x8x8xf32, #tpu.memory_space<vmem>>, vector<1x4x8x8xf32>
    %6 = vector.shape_cast %5 : vector<1x4x8x8xf32> to vector<4x8x8xf32>
    %cst = arith.constant dense<0.000000e+00> : vector<4x8x8xf32>
    %7 = tpu.matmul %4, %6, %cst {dimension_numbers = #tpu.dot_dimension_numbers<[2], [2], [1], [1], [0, 0, 0, 1, 1, 1], [0], [0]>} : vector<4x8x8xf32>, vector<4x8x8xf32>, vector<4x8x8xf32> -> vector<4x8x8xf32>
    %c0_8 = arith.constant 0 : index
    %c0_9 = arith.constant 0 : index
    %c0_10 = arith.constant 0 : index
    %8 = vector.load %arg8[%c0_8, %c0_9, %c0_10] : memref<4x8x1xf32, #tpu.memory_space<vmem>>, vector<4x8x1xf32>
    %cst_11 = arith.constant dense<0xFF800000> : vector<4x8xf32>
    %9 = vector.multi_reduction <maximumf>, %7, %cst_11 [2] : vector<4x8x8xf32> to vector<4x8xf32>
    %10 = vector.shape_cast %9 : vector<4x8xf32> to vector<4x8x1xf32>
    %11 = arith.maximumf %8, %10 : vector<4x8x1xf32>
    %12 = arith.subf %8, %11 : vector<4x8x1xf32>
    %13 = math.exp %12 : vector<4x8x1xf32>
    %14 = vector.broadcast %11 : vector<4x8x1xf32> to vector<4x8x8xf32>
    %15 = arith.subf %7, %14 : vector<4x8x8xf32>
    %16 = math.exp %15 : vector<4x8x8xf32>
    %c0_12 = arith.constant 0 : index
    %c0_13 = arith.constant 0 : index
    %c0_14 = arith.constant 0 : index
    %17 = vector.load %arg9[%c0_12, %c0_13, %c0_14] : memref<4x8x1xf32, #tpu.memory_space<vmem>>, vector<4x8x1xf32>
    %18 = arith.mulf %13, %17 : vector<4x8x1xf32>
    %cst_15 = arith.constant dense<0.000000e+00> : vector<4x8xf32>
    %19 = vector.multi_reduction <add>, %16, %cst_15 [2] : vector<4x8x8xf32> to vector<4x8xf32>
    %20 = vector.shape_cast %19 : vector<4x8xf32> to vector<4x8x1xf32>
    %21 = arith.addf %18, %20 : vector<4x8x1xf32>
    %c0_16 = arith.constant 0 : index
    %c0_17 = arith.constant 0 : index
    %c0_18 = arith.constant 0 : index
    %22 = vector.load %arg9[%c0_16, %c0_17, %c0_18] : memref<4x8x1xf32, #tpu.memory_space<vmem>>, vector<4x8x1xf32>
    tpu.vector_store %arg9[%c0_16, %c0_17, %c0_18], %21 {strides = array<i32>} : memref<4x8x1xf32, #tpu.memory_space<vmem>>, vector<4x8x1xf32>,
    %c0_19 = arith.constant 0 : index
    %c0_20 = arith.constant 0 : index
    %c0_21 = arith.constant 0 : index
    %23 = vector.load %arg10[%c0_19, %c0_20, %c0_21] : memref<4x8x8xf32, #tpu.memory_space<vmem>>, vector<4x8x8xf32>
    %24 = vector.broadcast %13 : vector<4x8x1xf32> to vector<4x8x8xf32>
    %25 = arith.mulf %24, %23 : vector<4x8x8xf32>
    %c0_22 = arith.constant 0 : index
    %c0_23 = arith.constant 0 : index
    %c0_24 = arith.constant 0 : index
    %c0_25 = arith.constant 0 : index
    %26 = vector.load %arg6[%c0_22, %c0_23, %c0_24, %c0_25] : memref<1x4x8x8xf32, #tpu.memory_space<vmem>>, vector<1x4x8x8xf32>
    %27 = vector.shape_cast %26 : vector<1x4x8x8xf32> to vector<4x8x8xf32>
    %cst_26 = arith.constant dense<0.000000e+00> : vector<4x8x8xf32>
    %28 = tpu.matmul %16, %27, %cst_26 {dimension_numbers = #tpu.dot_dimension_numbers<[2], [1], [1], [2], [0, 0, 0, 1, 1, 2], [0], [0]>} : vector<4x8x8xf32>, vector<4x8x8xf32>, vector<4x8x8xf32> -> vector<4x8x8xf32>
    %29 = arith.addf %25, %28 : vector<4x8x8xf32>
    %c0_27 = arith.constant 0 : index
    %c0_28 = arith.constant 0 : index
    %c0_29 = arith.constant 0 : index
    %30 = vector.load %arg10[%c0_27, %c0_28, %c0_29] : memref<4x8x8xf32, #tpu.memory_space<vmem>>, vector<4x8x8xf32>
    tpu.vector_store %arg10[%c0_27, %c0_28, %c0_29], %29 {strides = array<i32>} : memref<4x8x8xf32, #tpu.memory_space<vmem>>, vector<4x8x8xf32>,
    %c0_30 = arith.constant 0 : index
    %c0_31 = arith.constant 0 : index
    %c0_32 = arith.constant 0 : index
    %31 = vector.load %arg8[%c0_30, %c0_31, %c0_32] : memref<4x8x1xf32, #tpu.memory_space<vmem>>, vector<4x8x1xf32>
    tpu.vector_store %arg8[%c0_30, %c0_31, %c0_32], %11 {strides = array<i32>} : memref<4x8x1xf32, #tpu.memory_space<vmem>>, vector<4x8x1xf32>,
    %c0_i32_33 = arith.constant 0 : i32
    %32 = arith.cmpi eq, %arg3, %c0_i32_33 : i32
    %33 = arith.extui %32 : i1 to i32
    %c0_i32_34 = arith.constant 0 : i32
    %34 = arith.cmpi ne, %33, %c0_i32_34 : i32
    scf.if %34 {
      %c0_35 = arith.constant 0 : index
      %c0_36 = arith.constant 0 : index
      %c0_37 = arith.constant 0 : index
      %35 = vector.load %arg9[%c0_35, %c0_36, %c0_37] : memref<4x8x1xf32, #tpu.memory_space<vmem>>, vector<4x8x1xf32>
      %36 = tpu.reciprocal %35 : vector<4x8x1xf32> -> vector<4x8x1xf32>
      %c0_38 = arith.constant 0 : index
      %c0_39 = arith.constant 0 : index
      %c0_40 = arith.constant 0 : index
      %37 = vector.load %arg10[%c0_38, %c0_39, %c0_40] : memref<4x8x8xf32, #tpu.memory_space<vmem>>, vector<4x8x8xf32>
      %38 = vector.broadcast %36 : vector<4x8x1xf32> to vector<4x8x8xf32>
      %39 = arith.mulf %37, %38 : vector<4x8x8xf32>
      %c0_41 = arith.constant 0 : index
      %c0_42 = arith.constant 0 : index
      %c0_43 = arith.constant 0 : index
      %c0_44 = arith.constant 0 : index
      %40 = vector.load %arg7[%c0_41, %c0_42, %c0_43, %c0_44] : memref<1x4x8x8xf32, #tpu.memory_space<vmem>>, vector<1x4x8x8xf32>
      %41 = vector.shape_cast %40 : vector<1x4x8x8xf32> to vector<4x8x8xf32>
      %42 = vector.shape_cast %39 : vector<4x8x8xf32> to vector<1x4x8x8xf32>
      tpu.vector_store %arg7[%c0_41, %c0_42, %c0_43, %c0_44], %42 {strides = array<i32>} : memref<1x4x8x8xf32, #tpu.memory_space<vmem>>, vector<1x4x8x8xf32>,
    } else {
    }
    return
  }
  func.func @transform_0(%arg0: i32, %arg1: i32, %arg2: i32, %arg3: i32) -> (i32, i32, i32, i32) {
    %c0_i32 = arith.constant 0 : i32
    %c0_i32_0 = arith.constant 0 : i32
    return %arg0, %arg1, %arg2, %c0_i32 : i32, i32, i32, i32
  }
  func.func @transform_1(%arg0: i32, %arg1: i32, %arg2: i32, %arg3: i32) -> (i32, i32, i32, i32) {
    %c0_i32 = arith.constant 0 : i32
    %c0_i32_0 = arith.constant 0 : i32
    return %arg0, %arg1, %arg3, %c0_i32 : i32, i32, i32, i32
  }
  func.func @transform_2(%arg0: i32, %arg1: i32, %arg2: i32, %arg3: i32) -> (i32, i32, i32, i32) {
    %c0_i32 = arith.constant 0 : i32
    %c0_i32_0 = arith.constant 0 : i32
    return %arg0, %arg1, %arg3, %c0_i32 : i32, i32, i32, i32
  }
  func.func @transform_3(%arg0: i32, %arg1: i32, %arg2: i32, %arg3: i32) -> (i32, i32, i32, i32) {
    %c0_i32 = arith.constant 0 : i32
    %c0_i32_0 = arith.constant 0 : i32
    return %arg0, %arg1, %arg2, %c0_i32 : i32, i32, i32, i32
  }
}

module attributes {stable_mosaic.version = 11 : i64} {
  func.func @_linear_kernel(%arg0: i32, %arg1: i32, %arg2: i32, %arg3: memref<16x32xf32, #tpu.memory_space<vmem>>, %arg4: memref<32x32xf32, #tpu.memory_space<vmem>>, %arg5: memref<1x32xf32, #tpu.memory_space<vmem>>, %arg6: memref<16x32xf32, #tpu.memory_space<vmem>>, %arg7: memref<16x32xf32, #tpu.memory_space<vmem>>) attributes {dimension_semantics = [#tpu.dimension_semantics<parallel>, #tpu.dimension_semantics<parallel>, #tpu.dimension_semantics<arbitrary>], iteration_bounds = array<i64: 1, 1, 1>, scalar_prefetch = 0 : i64, scratch_operands = 1 : i64, tpu.core_type = #tpu.core_type<tc>, window_params = [{transform_indices = @transform_0, window_bounds = array<i64: 16, 32>}, {transform_indices = @transform_1, window_bounds = array<i64: 32, 32>}, {transform_indices = @transform_2, window_bounds = array<i64: 1, 32>}, {transform_indices = @transform_3, window_bounds = array<i64: 16, 32>}]} {
    %c0_i32 = arith.constant 0 : i32
    %0 = arith.cmpi eq, %arg2, %c0_i32 : i32
    %1 = arith.extui %0 : i1 to i32
    %c0_i32_0 = arith.constant 0 : i32
    %2 = arith.cmpi ne, %1, %c0_i32_0 : i32
    scf.if %2 {
      %cst_10 = arith.constant 0.000000e+00 : f32
      %12 = vector.broadcast %cst_10 : f32 to vector<16x32xf32>
      %c0_11 = arith.constant 0 : index
      %c0_12 = arith.constant 0 : index
      %13 = vector.load %arg7[%c0_11, %c0_12] : memref<16x32xf32, #tpu.memory_space<vmem>>, vector<16x32xf32>
      tpu.vector_store %arg7[%c0_11, %c0_12], %12 {strides = array<i32>} : memref<16x32xf32, #tpu.memory_space<vmem>>, vector<16x32xf32>,
    } else {
    }
    %c0 = arith.constant 0 : index
    %c0_1 = arith.constant 0 : index
    %3 = vector.load %arg7[%c0, %c0_1] : memref<16x32xf32, #tpu.memory_space<vmem>>, vector<16x32xf32>
    %c0_2 = arith.constant 0 : index
    %c0_3 = arith.constant 0 : index
    %4 = vector.load %arg3[%c0_2, %c0_3] : memref<16x32xf32, #tpu.memory_space<vmem>>, vector<16x32xf32>
    %c0_4 = arith.constant 0 : index
    %c0_5 = arith.constant 0 : index
    %5 = vector.load %arg4[%c0_4, %c0_5] : memref<32x32xf32, #tpu.memory_space<vmem>>, vector<32x32xf32>
    %cst = arith.constant dense<0.000000e+00> : vector<16x32xf32>
    %6 = tpu.matmul %4, %5, %cst {dimension_numbers = #tpu.dot_dimension_numbers<[1], [0], [0], [1], [0, 0, 1, 1], [], []>} : vector<16x32xf32>, vector<32x32xf32>, vector<16x32xf32> -> vector<16x32xf32>
    %7 = arith.addf %3, %6 : vector<16x32xf32>
    %c0_6 = arith.constant 0 : index
    %c0_7 = arith.constant 0 : index
    %8 = vector.load %arg7[%c0_6, %c0_7] : memref<16x32xf32, #tpu.memory_space<vmem>>, vector<16x32xf32>
    tpu.vector_store %arg7[%c0_6, %c0_7], %7 {strides = array<i32>} : memref<16x32xf32, #tpu.memory_space<vmem>>, vector<16x32xf32>,
    %c0_i32_8 = arith.constant 0 : i32
    %9 = arith.cmpi eq, %arg2, %c0_i32_8 : i32
    %10 = arith.extui %9 : i1 to i32
    %c0_i32_9 = arith.constant 0 : i32
    %11 = arith.cmpi ne, %10, %c0_i32_9 : i32
    scf.if %11 {
      %c0_10 = arith.constant 0 : index
      %c0_11 = arith.constant 0 : index
      %12 = vector.load %arg7[%c0_10, %c0_11] : memref<16x32xf32, #tpu.memory_space<vmem>>, vector<16x32xf32>
      %c0_12 = arith.constant 0 : index
      %c0_13 = arith.constant 0 : index
      %13 = vector.load %arg5[%c0_12, %c0_13] : memref<1x32xf32, #tpu.memory_space<vmem>>, vector<1x32xf32>
      %14 = vector.broadcast %13 : vector<1x32xf32> to vector<16x32xf32>
      %15 = arith.addf %12, %14 : vector<16x32xf32>
      %c0_14 = arith.constant 0 : index
      %c0_15 = arith.constant 0 : index
      %16 = vector.load %arg6[%c0_14, %c0_15] : memref<16x32xf32, #tpu.memory_space<vmem>>, vector<16x32xf32>
      tpu.vector_store %arg6[%c0_14, %c0_15], %15 {strides = array<i32>} : memref<16x32xf32, #tpu.memory_space<vmem>>, vector<16x32xf32>,
    } else {
    }
    return
  }
  func.func @transform_0(%arg0: i32, %arg1: i32, %arg2: i32) -> (i32, i32) {
    %c0_i32 = arith.constant 0 : i32
    return %arg0, %arg2 : i32, i32
  }
  func.func @transform_1(%arg0: i32, %arg1: i32, %arg2: i32) -> (i32, i32) {
    %c0_i32 = arith.constant 0 : i32
    return %arg2, %arg1 : i32, i32
  }
  func.func @transform_2(%arg0: i32, %arg1: i32, %arg2: i32) -> (i32, i32) {
    %c0_i32 = arith.constant 0 : i32
    %c0_i32_0 = arith.constant 0 : i32
    return %c0_i32, %arg1 : i32, i32
  }
  func.func @transform_3(%arg0: i32, %arg1: i32, %arg2: i32) -> (i32, i32) {
    %c0_i32 = arith.constant 0 : i32
    return %arg0, %arg1 : i32, i32
  }
}

</mosaic_0001>

<llo_original>
// kernel: causal_self_attention.3
$region0: #{causal_self_attention.3}
  #allocation0 [shape = 'u32[]', space=smem, size = 0x4, offset = 0x4, fixed_abs, tag = 'smem constant byte address 0x4 - core index']
  #allocation1 [shape = 'u32[144,128]{1,0:T(1,128)}', space=vmem, size = 0x12000, scoped, tag = 'internal scratch']
  #allocation2 [shape = 'f32[16,96]{1,0:T(8,128)}', space=vmem, size = 0x2000, scoped, tag = 'scratch operand']
  %s0 = inlined_call_operand.vmem [shape: f32[16,32], index: 0, kind: input, shape index: {}]
  %s1 = inlined_call_operand.vmem [shape: f32[32,96], index: 1, kind: input, shape index: {}]
  %s2 = inlined_call_operand.vmem [shape: f32[1,96], index: 2, kind: input, shape index: {}]
  %s3 = inlined_call_operand.vmem [shape: f32[16,96], index: 3, kind: output, shape index: {}]
  %s4 = sld [smem:[#allocation0]]
  $region30: #{causal_self_attention.3} parent=0
    _
  %s6 = ssub.s32 1, %s4
  %s7 = scalar_select 0, %s6, %s4
  // Predicated region
  $region2: #{causal_self_attention.3} parent=0 // pred_check
    _
  $region3: #{causal_self_attention.3} parent=0 // pred_check_branch
    %9 = sbr.rel (0) target = $region5
  $region4: #{causal_self_attention.3} parent=0 // pred_region
    _
  $region5: #{causal_self_attention.3} parent=0 // pred_fallthru
    _
  // Predicated region
  $region6: #{causal_self_attention.3} parent=0 // pred_check
    _
  $region7: #{causal_self_attention.3} parent=0 // pred_check_branch
    %11 = sbr.rel (0) target = $region9
  $region8: #{causal_self_attention.3} parent=0 // pred_region
    _
  $region9: #{causal_self_attention.3} parent=0 // pred_fallthru
    _
  // Predicated region
  $region10: #{causal_self_attention.3} parent=0 // pred_check
    _
  $region11: #{causal_self_attention.3} parent=0 // pred_check_branch
    %13 = sbr.rel (0) target = $region13
  $region12: #{causal_self_attention.3} parent=0 // pred_region
    _
  $region13: #{causal_self_attention.3} parent=0 // pred_fallthru
    _
  %p14 = scmp.eq.s32.totalorder 0, 0
  // Predicated region
  $region14: #{causal_self_attention.3} parent=0 // pred_check
    %p15 = pneg %p14
  $region15: #{causal_self_attention.3} parent=0 // pred_check_branch
    %17 = sbr.rel (%p15) target = $region17
  $region16: #{causal_self_attention.3} parent=0 // pred_region
    %vm18 = vcmask 785408
    %19 = vst.msk [vmem:[#allocation2] sm:$0xff] %vm18, 0.0
    %20 = vst.msk [vmem:[#allocation2 + $0x8] sm:$0xff] %vm18, 0.0
  $region17: #{causal_self_attention.3} parent=0 // pred_fallthru
    _
  %v21 = vld [vmem:[#allocation2] sm:$0xff]
  %v22 = vld [vmem:[#allocation2 + $0x8] sm:$0xff]
  %v23 = vld [vmem:[%s0] sm:$0xff]
  %v24 = vld [vmem:[%s0 + $0x8] sm:$0xff]
  %v25 = vld [vmem:[%s1] sm:$0xff]
  %v26 = vld [vmem:[%s1 + $0x8] sm:$0xff]
  %v27 = vld [vmem:[%s1 + $0x10] sm:$0xff]
  %v28 = vld [vmem:[%s1 + $0x18] sm:$0xff]
  %vm29 = vcmask 261120
  %v31 = vsel %vm29, %v23, 0
  %v34 = vsel %vm29, %v24, 0
  %36 = vmatprep.subr.mxu0 0.0
  %37 = vmatpush1.msra.mxu0 0.0
  %38 = vmatprep.subr.mxu0 0.0
  %39 = vmatpush1.msra.mxu0 0.0
  %40 = vmatprep.subr.mxu0 0.0
  %41 = vmatpush1.msra.mxu0 0.0
  %42 = vmatprep.subr.mxu0 0.0
  %43 = vmatpush1.msra.mxu0 0.0
  %44 = vmatprep.subr.mxu0 0.0
  %45 = vmatpush1.msra.mxu0 0.0
  %46 = vmatprep.subr.mxu0 0.0
  %47 = vmatpush1.msra.mxu0 0.0
  %48 = vmatprep.subr.mxu0 0.0
  %49 = vmatpush1.msra.mxu0 0.0
  %50 = vmatprep.subr.mxu0 0.0
  %51 = vmatpush1.msra.mxu0 0.0
  %52 = vmatprep.subr.mxu0 0.0
  %53 = vmatpush1.msra.mxu0 0.0
  %54 = vmatprep.subr.mxu0 0.0
  %55 = vmatpush1.msra.mxu0 0.0
  %56 = vmatprep.subr.mxu0 0.0
  %57 = vmatpush1.msra.mxu0 0.0
  %58 = vmatprep.subr.mxu0 0.0
  %59 = vmatpush1.msra.mxu0 0.0
  %60 = vmatprep.subr.mxu0 0.0
  %61 = vmatpush1.msra.mxu0 %v28
  %62 = vmatprep.subr.mxu0 0.0
  %63 = vmatpush1.msra.mxu0 %v27
  %64 = vmatprep.subr.mxu0 0.0
  %65 = vmatpush1.msra.mxu0 %v26
  %66 = vmatprep.subr.mxu0 0.0
  %67 = vmatpush1.msra.mxu0 %v25
  %68 = vmatprep.subr.mxu0 0.0
  %69 = vmatpush2.msra.mxu0 0.0
  %70 = vmatprep.subr.mxu0 0.0
  %71 = vmatpush2.msra.mxu0 0.0
  %72 = vmatprep.subr.mxu0 0.0
  %73 = vmatpush2.msra.mxu0 0.0
  %74 = vmatprep.subr.mxu0 0.0
  %75 = vmatpush2.msra.mxu0 0.0
  %76 = vmatprep.subr.mxu0 0.0
  %77 = vmatpush2.msra.mxu0 0.0
  %78 = vmatprep.subr.mxu0 0.0
  %79 = vmatpush2.msra.mxu0 0.0
  %80 = vmatprep.subr.mxu0 0.0
  %81 = vmatpush2.msra.mxu0 0.0
  %82 = vmatprep.subr.mxu0 0.0
  %83 = vmatpush2.msra.mxu0 0.0
  %84 = vmatprep.subr.mxu0 0.0
  %85 = vmatpush2.msra.mxu0 0.0
  %86 = vmatprep.subr.mxu0 0.0
  %87 = vmatpush2.msra.mxu0 0.0
  %88 = vmatprep.subr.mxu0 0.0
  %89 = vmatpush2.msra.mxu0 0.0
  %90 = vmatprep.subr.mxu0 0.0
  %91 = vmatpush2.msra.mxu0 0.0
  %92 = vmatprep.subr.mxu0 0.0
  %93 = vmatpush2.msra.mxu0 0.0
  %94 = vmatprep.subr.mxu0 0.0
  %95 = vmatpush2.msra.mxu0 0.0
  %96 = vmatprep.subr.mxu0 0.0
  %97 = vmatpush2.msra.mxu0 0.0
  %98 = vmatprep.subr.mxu0 0.0
  %99 = vmatpush2.msra.mxu0 0.0
  %100 = vmatprep.mubr.f32.mxu0 0.0
  %101 = vmatmul.mubr.f32.gmra.mxu0 %v31
  %v102 = vpop.f32.mrf.mxu0
  %v103 = vadd.f32 0.0, %v102
  %v104 = vpop.f32.mrf.mxu0
  %105 = vmatprep.mubr.f32.mxu0 0.0
  %106 = vmatmul.mubr.f32.gmra.mxu0 %v34
  %v107 = vpop.f32.mrf.mxu0
  %v108 = vadd.f32 0.0, %v107
  %v109 = vpop.f32.mrf.mxu0
  %110 = vdwg.mxu0
  %v111 = vadd.f32 %v21, %v103
  %v112 = vadd.f32 %v22, %v108
  %vm113 = vcmask 785408
  %114 = vst.msk [vmem:[#allocation2] sm:$0xff] %vm113, %v111
  %115 = vst.msk [vmem:[#allocation2 + $0x8] sm:$0xff] %vm113, %v112
  // Predicated region
  $region18: #{causal_self_attention.3} parent=0 // pred_check
    %p116 = pneg %p14
  $region19: #{causal_self_attention.3} parent=0 // pred_check_branch
    %118 = sbr.rel (%p116) target = $region21
  $region20: #{causal_self_attention.3} parent=0 // pred_region
    %v119 = vld [vmem:[#allocation2] sm:$0xff]
    %v120 = vld [vmem:[#allocation2 + $0x8] sm:$0xff]
    %v121 = vld [vmem:[%s2] sm:$0x1]
    %v123 = vlaneseq
    %v124 = vshrl.u32 %v123, 7
    %v125 = vsub.s32 0, %v124
    %v126 = vrot.slane %v121, %v125
    %v128 = vadd.f32 %v119, %v126
    %v129 = vadd.f32 %v120, %v126
    %130 = vst.msk [vmem:[%s3] sm:$0xff] %vm113, %v128
    %131 = vst.msk [vmem:[%s3 + $0x8] sm:$0xff] %vm113, %v129
  $region21: #{causal_self_attention.3} parent=0 // pred_fallthru
    _
  // Predicated region
  $region22: #{causal_self_attention.3} parent=0 // pred_check
    _
  $region23: #{causal_self_attention.3} parent=0 // pred_check_branch
    %133 = sbr.rel (0) target = $region25
  $region24: #{causal_self_attention.3} parent=0 // pred_region
    _
  $region25: #{causal_self_attention.3} parent=0 // pred_fallthru
    _
  // Predicated region
  $region26: #{causal_self_attention.3} parent=0 // pred_check
    _
  $region27: #{causal_self_attention.3} parent=0 // pred_check_branch
    %135 = sbr.rel (0) target = $region29
  $region28: #{causal_self_attention.3} parent=0 // pred_region
    _
  $region29: #{causal_self_attention.3} parent=0 // pred_fallthru
    _

// kernel: causal_self_attention.5
$region0: #{causal_self_attention.5}
  #allocation0 [shape = 'u32[]', space=smem, size = 0x4, offset = 0x4, fixed_abs, tag = 'smem constant byte address 0x4 - core index']
  #allocation1 [shape = 'u32[144,128]{1,0:T(1,128)}', space=vmem, size = 0x12000, scoped, tag = 'internal scratch']
  #allocation2 [shape = 'f32[16,32]{1,0:T(8,128)}', space=vmem, size = 0x2000, scoped, tag = 'scratch operand']
  %s0 = inlined_call_operand.vmem [shape: f32[16,32], index: 0, kind: input, shape index: {}]
  %s1 = inlined_call_operand.vmem [shape: f32[32,32], index: 1, kind: input, shape index: {}]
  %s2 = inlined_call_operand.vmem [shape: f32[1,32], index: 2, kind: input, shape index: {}]
  %s3 = inlined_call_operand.hbm [shape: f32[16,32], index: 3, kind: output, shape index: {}]
  %s4 = sld [smem:[#allocation0]]
  $region30: #{causal_self_attention.5} parent=0
    _
  %s6 = ssub.s32 1, %s4
  %s7 = scalar_select 0, %s6, %s4
  $region1: #{causal_self_attention.5} parent=0
    #allocation3 [shape = 'u8[8192]{0}', space=vmem, size = 0x2000, scoped, tag = 'output window, operand 0, single buffered']
    #allocation4 [shape = 's32[1]{0}', space=sflag, size = 0x4, scoped, tag = 'scoped memory for causal_self_attention.5']
    %8 = vsyncpa [#allocation4], 0
    // Predicated region
    $region2: #{causal_self_attention.5} parent=1 // pred_check
      _
    $region3: #{causal_self_attention.5} parent=1 // pred_check_branch
      %10 = sbr.rel (0) target = $region5
    $region4: #{causal_self_attention.5} parent=1 // pred_region
      _
    $region5: #{causal_self_attention.5} parent=1 // pred_fallthru
      _
    // Predicated region
    $region6: #{causal_self_attention.5} parent=1 // pred_check
      _
    $region7: #{causal_self_attention.5} parent=1 // pred_check_branch
      %12 = sbr.rel (0) target = $region9
    $region8: #{causal_self_attention.5} parent=1 // pred_region
      _
    $region9: #{causal_self_attention.5} parent=1 // pred_fallthru
      _
    // Predicated region
    $region10: #{causal_self_attention.5} parent=1 // pred_check
      _
    $region11: #{causal_self_attention.5} parent=1 // pred_check_branch
      %14 = sbr.rel (0) target = $region13
    $region12: #{causal_self_attention.5} parent=1 // pred_region
      _
    $region13: #{causal_self_attention.5} parent=1 // pred_fallthru
      _
    %p15 = scmp.eq.s32.totalorder 0, 0
    // Predicated region
    $region14: #{causal_self_attention.5} parent=1 // pred_check
      %p16 = pneg %p15
    $region15: #{causal_self_attention.5} parent=1 // pred_check_branch
      %18 = sbr.rel (%p16) target = $region17
    $region16: #{causal_self_attention.5} parent=1 // pred_region
      %vm19 = vcmask 261120
      %20 = vst.msk [vmem:[#allocation2] sm:$0xff] %vm19, 0.0
      %21 = vst.msk [vmem:[#allocation2 + $0x8] sm:$0xff] %vm19, 0.0
    $region17: #{causal_self_attention.5} parent=1 // pred_fallthru
      _
    %v22 = vld [vmem:[#allocation2] sm:$0xff]
    %v23 = vld [vmem:[#allocation2 + $0x8] sm:$0xff]
    %v24 = vld [vmem:[%s0] sm:$0xff]
    %v25 = vld [vmem:[%s0 + $0x8] sm:$0xff]
    %v26 = vld [vmem:[%s1] sm:$0xff]
    %v27 = vld [vmem:[%s1 + $0x8] sm:$0xff]
    %v28 = vld [vmem:[%s1 + $0x10] sm:$0xff]
    %v29 = vld [vmem:[%s1 + $0x18] sm:$0xff]
    %vm30 = vcmask 261120
    %v32 = vsel %vm30, %v24, 0
    %v35 = vsel %vm30, %v25, 0
    %37 = vmatprep.subr.mxu0 0.0
    %38 = vmatpush1.msra.mxu0 0.0
    %39 = vmatprep.subr.mxu0 0.0
    %40 = vmatpush1.msra.mxu0 0.0
    %41 = vmatprep.subr.mxu0 0.0
    %42 = vmatpush1.msra.mxu0 0.0
    %43 = vmatprep.subr.mxu0 0.0
    %44 = vmatpush1.msra.mxu0 0.0
    %45 = vmatprep.subr.mxu0 0.0
    %46 = vmatpush1.msra.mxu0 0.0
    %47 = vmatprep.subr.mxu0 0.0
    %48 = vmatpush1.msra.mxu0 0.0
    %49 = vmatprep.subr.mxu0 0.0
    %50 = vmatpush1.msra.mxu0 0.0
    %51 = vmatprep.subr.mxu0 0.0
    %52 = vmatpush1.msra.mxu0 0.0
    %53 = vmatprep.subr.mxu0 0.0
    %54 = vmatpush1.msra.mxu0 0.0
    %55 = vmatprep.subr.mxu0 0.0
    %56 = vmatpush1.msra.mxu0 0.0
    %57 = vmatprep.subr.mxu0 0.0
    %58 = vmatpush1.msra.mxu0 0.0
    %59 = vmatprep.subr.mxu0 0.0
    %60 = vmatpush1.msra.mxu0 0.0
    %61 = vmatprep.subr.mxu0 0.0
    %62 = vmatpush1.msra.mxu0 %v29
    %63 = vmatprep.subr.mxu0 0.0
    %64 = vmatpush1.msra.mxu0 %v28
    %65 = vmatprep.subr.mxu0 0.0
    %66 = vmatpush1.msra.mxu0 %v27
    %67 = vmatprep.subr.mxu0 0.0
    %68 = vmatpush1.msra.mxu0 %v26
    %69 = vmatprep.subr.mxu0 0.0
    %70 = vmatpush2.msra.mxu0 0.0
    %71 = vmatprep.subr.mxu0 0.0
    %72 = vmatpush2.msra.mxu0 0.0
    %73 = vmatprep.subr.mxu0 0.0
    %74 = vmatpush2.msra.mxu0 0.0
    %75 = vmatprep.subr.mxu0 0.0
    %76 = vmatpush2.msra.mxu0 0.0
    %77 = vmatprep.subr.mxu0 0.0
    %78 = vmatpush2.msra.mxu0 0.0
    %79 = vmatprep.subr.mxu0 0.0
    %80 = vmatpush2.msra.mxu0 0.0
    %81 = vmatprep.subr.mxu0 0.0
    %82 = vmatpush2.msra.mxu0 0.0
    %83 = vmatprep.subr.mxu0 0.0
    %84 = vmatpush2.msra.mxu0 0.0
    %85 = vmatprep.subr.mxu0 0.0
    %86 = vmatpush2.msra.mxu0 0.0
    %87 = vmatprep.subr.mxu0 0.0
    %88 = vmatpush2.msra.mxu0 0.0
    %89 = vmatprep.subr.mxu0 0.0
    %90 = vmatpush2.msra.mxu0 0.0
    %91 = vmatprep.subr.mxu0 0.0
    %92 = vmatpush2.msra.mxu0 0.0
    %93 = vmatprep.subr.mxu0 0.0
    %94 = vmatpush2.msra.mxu0 0.0
    %95 = vmatprep.subr.mxu0 0.0
    %96 = vmatpush2.msra.mxu0 0.0
    %97 = vmatprep.subr.mxu0 0.0
    %98 = vmatpush2.msra.mxu0 0.0
    %99 = vmatprep.subr.mxu0 0.0
    %100 = vmatpush2.msra.mxu0 0.0
    %101 = vmatprep.mubr.f32.mxu0 0.0
    %102 = vmatmul.mubr.f32.gmra.mxu0 %v32
    %v103 = vpop.f32.mrf.mxu0
    %v104 = vadd.f32 0.0, %v103
    %v105 = vpop.f32.mrf.mxu0
    %106 = vmatprep.mubr.f32.mxu0 0.0
    %107 = vmatmul.mubr.f32.gmra.mxu0 %v35
    %v108 = vpop.f32.mrf.mxu0
    %v109 = vadd.f32 0.0, %v108
    %v110 = vpop.f32.mrf.mxu0
    %111 = vdwg.mxu0
    %v112 = vadd.f32 %v22, %v104
    %v113 = vadd.f32 %v23, %v109
    %114 = vst.msk [vmem:[#allocation2] sm:$0xff] %vm30, %v112
    %115 = vst.msk [vmem:[#allocation2 + $0x8] sm:$0xff] %vm30, %v113
    // Predicated region
    $region18: #{causal_self_attention.5} parent=1 // pred_check
      %p116 = pneg %p15
    $region19: #{causal_self_attention.5} parent=1 // pred_check_branch
      %118 = sbr.rel (%p116) target = $region21
    $region20: #{causal_self_attention.5} parent=1 // pred_region
      %v119 = vld [vmem:[#allocation2] sm:$0xff]
      %v120 = vld [vmem:[#allocation2 + $0x8] sm:$0xff]
      %v121 = vld [vmem:[%s2] sm:$0x1]
      %v123 = vlaneseq
      %v124 = vshrl.u32 %v123, 7
      %v125 = vsub.s32 0, %v124
      %v126 = vrot.slane %v121, %v125
      %v128 = vadd.f32 %v119, %v126
      %v129 = vadd.f32 %v120, %v126
      %130 = vst.msk [vmem:[#allocation3] sm:$0xff] %vm30, %v128
      %131 = vst.msk [vmem:[#allocation3 + $0x8] sm:$0xff] %vm30, %v129
    $region21: #{causal_self_attention.5} parent=1 // pred_fallthru
      _
    // Predicated region
    $region22: #{causal_self_attention.5} parent=1 // pred_check
      _
    $region23: #{causal_self_attention.5} parent=1 // pred_check_branch
      %133 = sbr.rel (0) target = $region25
    $region24: #{causal_self_attention.5} parent=1 // pred_region
      %s135 = ssub.s32 256, 256
      %136 = vsyncadd [#allocation4], %s135
      %s137 = sshll.u32 [#allocation3], 4
      %s138 = int_to_ptr.vmem [resolvable:$true] %s137
      %143 = dma.vmem_to_hbm [thread:$0]  %s138, 256, %s3, [#allocation4], 128, 128, 8
    $region25: #{causal_self_attention.5} parent=1 // pred_fallthru
      _
    // Predicated region
    $region26: #{causal_self_attention.5} parent=1 // pred_check
      _
    $region27: #{causal_self_attention.5} parent=1 // pred_check_branch
      %145 = sbr.rel (0) target = $region29
    $region28: #{causal_self_attention.5} parent=1 // pred_region
      %146 = dma.done [#allocation4], 256
    $region29: #{causal_self_attention.5} parent=1 // pred_fallthru
      _
    %147 = vsyncpa [#allocation4], 1

// kernel: causal_self_attention.4
$region0: #{causal_self_attention.4}
  #allocation0 [shape = 'u32[]', space=smem, size = 0x4, offset = 0x4, fixed_abs, tag = 'smem constant byte address 0x4 - core index']
  #allocation1 [shape = 'u32[144,128]{1,0:T(1,128)}', space=vmem, size = 0x12000, scoped, tag = 'internal scratch']
  #allocation2 [shape = 'f32[4,8,1]{2,1,0:T(8,128)}', space=vmem, size = 0x4000, scoped, tag = 'scratch operand']
  #allocation3 [shape = 'f32[4,8,1]{2,1,0:T(8,128)}', space=vmem, size = 0x4000, scoped, tag = 'scratch operand']
  #allocation4 [shape = 'f32[4,8,8]{2,1,0:T(8,128)}', space=vmem, size = 0x4000, scoped, tag = 'scratch operand']
  %s0 = inlined_call_operand.vmem [shape: f32[2,4,8,8], index: 0, kind: input, shape index: {}]
  %s1 = inlined_call_operand.vmem [shape: f32[2,4,8,8], index: 1, kind: input, shape index: {}]
  %s2 = inlined_call_operand.vmem [shape: f32[2,4,8,8], index: 2, kind: input, shape index: {}]
  %s3 = inlined_call_operand.vmem [shape: f32[2,4,8,8], index: 3, kind: output, shape index: {}]
  %s4 = sld [smem:[#allocation0]]
  $region53: #{causal_self_attention.4} parent=0
    _
  %s6 = ssub.s32 1, %s4
  %s7 = scalar_select 0, %s6, %s4
  loop: start=0, step=1, limit=4
  $region2: #{causal_self_attention.4} parent=0 // loop_pre_header
    _
  $region3: #{causal_self_attention.4} parent=0 // loop_header
    %s9 = sphi 0, %s13
    %p10 = scmp.ge.s32.totalorder %s9, 4
    %s16 = sphi 0, %s42
    %s17 = sphi 0, %s38
    %s18 = sphi 0, %s34
    %s19 = sphi 0, %s30
    %s20 = sphi 0, %s16
    %s21 = sphi 0, %s17
    %s22 = sphi 0, %s18
    %s23 = sphi 0, %s19
    %s24 = sphi 0, %s20
    %s25 = sphi 0, %s21
    %s26 = sphi 0, %s22
    %s27 = sphi 0, %s23
    %s49 = sphi 0, %s51
    %s52 = sphi 0, %s49
    %s53 = sphi 0, %s52
    %s69 = sphi 0, %s53
    %s79 = sphi 0, %s81
    %s82 = sphi 0, %s79
    %s83 = sphi 0, %s82
    %s99 = sphi 0, %s83
    %s109 = sphi 0, %s111
    %s112 = sphi 0, %s109
    %s113 = sphi 0, %s112
    %s129 = sphi 0, %s113
    %s139 = sphi 0, %s141
    %s142 = sphi 0, %s139
    %s143 = sphi 0, %s142
    %s159 = sphi 0, %s143
  $region4: #{causal_self_attention.4} parent=0 // loop_header_branch
    %12 = sbr.rel (%p10) target = $region8
  $region5: #{causal_self_attention.4} parent=0 // loop_body
    %s14 = ssub.s32 %s9, 1
    %s15 = ssub.s32 %s9, 2
    %s28 = sadd.s32 1, %s19
    %p29 = scmp.ge.s32.totalorder %s28, 1
    %s30 = scalar_select %p29, 0, %s28
    %s31 = sadd.s32 1, %s18
    %s32 = scalar_select %p29, %s31, %s18
    %p33 = scmp.ge.s32.totalorder %s32, 1
    %s34 = scalar_select %p33, 0, %s32
    %s35 = sadd.s32 1, %s17
    %s36 = scalar_select %p33, %s35, %s17
    %p37 = scmp.ge.s32.totalorder %s36, 1
    %s38 = scalar_select %p37, 0, %s36
    %s39 = sadd.s32 1, %s16
    %s40 = scalar_select %p37, %s39, %s16
    %p41 = scmp.ge.s32.totalorder %s40, 2
    %s42 = scalar_select %p41, 0, %s40
    %s43 = ssub.s32 %s16, %s42
    %s44 = ssub.s32 %s17, %s38
    %s45 = sor.u32 %s43, %s44
    %s46 = ssub.s32 %s18, %s34
    %s47 = sor.u32 %s45, %s46
    %p48 = scmp.eq.s32.totalorder %s47, 0
    %s50 = sadd.s32 %s49, 1
    %s51 = scalar_select %p48, %s49, %s50
    %p54 = pneg %p48
    %p55 = scmp.eq.s32.totalorder %s9, 1
    %p56 = por %p54, %p55
    %p57 = scmp.ne.s32.totalorder %s49, %s52
    %p58 = scmp.eq.s32.totalorder %s9, 0
    %p59 = por %p57, %p58
    %p60 = scmp.ne.s32.totalorder %s49, %s52
    %p61 = scmp.eq.s32.totalorder %s14, 1
    %p62 = por %p60, %p61
    %p63 = scmp.ne.s32.totalorder %s52, %s53
    %p64 = scmp.eq.s32.totalorder %s14, 0
    %p65 = por %p63, %p64
    %p66 = scmp.ne.s32.totalorder %s52, %s53
    %p67 = scmp.eq.s32.totalorder %s15, 1
    %p68 = por %p66, %p67
    %p70 = scmp.ne.s32.totalorder %s53, %s69
    %p71 = scmp.eq.s32.totalorder %s15, 0
    %p72 = por %p70, %p71
    %s73 = ssub.s32 %s16, %s42
    %s74 = ssub.s32 %s17, %s38
    %s75 = sor.u32 %s73, %s74
    %s76 = ssub.s32 %s19, %s30
    %s77 = sor.u32 %s75, %s76
    %p78 = scmp.eq.s32.totalorder %s77, 0
    %s80 = sadd.s32 %s79, 1
    %s81 = scalar_select %p78, %s79, %s80
    %p84 = pneg %p78
    %p85 = scmp.eq.s32.totalorder %s9, 1
    %p86 = por %p84, %p85
    %p87 = scmp.ne.s32.totalorder %s79, %s82
    %p88 = scmp.eq.s32.totalorder %s9, 0
    %p89 = por %p87, %p88
    %p90 = scmp.ne.s32.totalorder %s79, %s82
    %p91 = scmp.eq.s32.totalorder %s14, 1
    %p92 = por %p90, %p91
    %p93 = scmp.ne.s32.totalorder %s82, %s83
    %p94 = scmp.eq.s32.totalorder %s14, 0
    %p95 = por %p93, %p94
    %p96 = scmp.ne.s32.totalorder %s82, %s83
    %p97 = scmp.eq.s32.totalorder %s15, 1
    %p98 = por %p96, %p97
    %p100 = scmp.ne.s32.totalorder %s83, %s99
    %p101 = scmp.eq.s32.totalorder %s15, 0
    %p102 = por %p100, %p101
    %s103 = ssub.s32 %s16, %s42
    %s104 = ssub.s32 %s17, %s38
    %s105 = sor.u32 %s103, %s104
    %s106 = ssub.s32 %s19, %s30
    %s107 = sor.u32 %s105, %s106
    %p108 = scmp.eq.s32.totalorder %s107, 0
    %s110 = sadd.s32 %s109, 1
    %s111 = scalar_select %p108, %s109, %s110
    %p114 = pneg %p108
    %p115 = scmp.eq.s32.totalorder %s9, 1
    %p116 = por %p114, %p115
    %p117 = scmp.ne.s32.totalorder %s109, %s112
    %p118 = scmp.eq.s32.totalorder %s9, 0
    %p119 = por %p117, %p118
    %p120 = scmp.ne.s32.totalorder %s109, %s112
    %p121 = scmp.eq.s32.totalorder %s14, 1
    %p122 = por %p120, %p121
    %p123 = scmp.ne.s32.totalorder %s112, %s113
    %p124 = scmp.eq.s32.totalorder %s14, 0
    %p125 = por %p123, %p124
    %p126 = scmp.ne.s32.totalorder %s112, %s113
    %p127 = scmp.eq.s32.totalorder %s15, 1
    %p128 = por %p126, %p127
    %p130 = scmp.ne.s32.totalorder %s113, %s129
    %p131 = scmp.eq.s32.totalorder %s15, 0
    %p132 = por %p130, %p131
    %s133 = ssub.s32 %s16, %s42
    %s134 = ssub.s32 %s17, %s38
    %s135 = sor.u32 %s133, %s134
    %s136 = ssub.s32 %s18, %s34
    %s137 = sor.u32 %s135, %s136
    %p138 = scmp.eq.s32.totalorder %s137, 0
    %s140 = sadd.s32 %s139, 1
    %s141 = scalar_select %p138, %s139, %s140
    %p144 = pneg %p138
    %p145 = scmp.eq.s32.totalorder %s9, 1
    %p146 = por %p144, %p145
    %p147 = scmp.ne.s32.totalorder %s139, %s142
    %p148 = scmp.eq.s32.totalorder %s9, 0
    %p149 = por %p147, %p148
    %p150 = scmp.ne.s32.totalorder %s139, %s142
    %p151 = scmp.eq.s32.totalorder %s14, 1
    %p152 = por %p150, %p151
    %p153 = scmp.ne.s32.totalorder %s142, %s143
    %p154 = scmp.eq.s32.totalorder %s14, 0
    %p155 = por %p153, %p154
    %p156 = scmp.ne.s32.totalorder %s142, %s143
    %p157 = scmp.eq.s32.totalorder %s15, 1
    %p158 = por %p156, %p157
    %p160 = scmp.ne.s32.totalorder %s143, %s159
    %p161 = scmp.eq.s32.totalorder %s15, 0
    %p162 = por %p160, %p161
    %p163 = scmp.le.s32.totalorder 1, %s9
    %p164 = scmp.lt.s32.totalorder %s9, 3
    %p165 = pnand %p163, %p164
    %p166 = pneg %p165
    // Predicated region
    $region9: #{causal_self_attention.4} parent=5 // pred_check
      _
    $region10: #{causal_self_attention.4} parent=5 // pred_check_branch
      %168 = sbr.rel (%p165) target = $region12
    $region11: #{causal_self_attention.4} parent=5 // pred_region
      %s169 = ssub.s32 %s9, 1
    $region12: #{causal_self_attention.4} parent=5 // pred_fallthru
      _
    %p170 = scmp.lt.s32.totalorder %s9, 2
    // Predicated region
    $region13: #{causal_self_attention.4} parent=5 // pred_check
      %p171 = pneg %p170
    $region14: #{causal_self_attention.4} parent=5 // pred_check_branch
      %173 = sbr.rel (%p171) target = $region16
    $region15: #{causal_self_attention.4} parent=5 // pred_region
      // Predicated region
      $region17: #{causal_self_attention.4} parent=15 // pred_check
        %p174 = pneg %p59
      $region18: #{causal_self_attention.4} parent=15 // pred_check_branch
        %176 = sbr.rel (%p174) target = $region20
      $region19: #{causal_self_attention.4} parent=15 // pred_region
        %s177 = smul.u32 4, %s17
        %p178 = scmp.lt.s32.totalorder %s16, 1
        %s179 = scalar_select %p178, %s16, 1
        %p180 = scmp.lt.s32.totalorder %s177, 3
        %s181 = scalar_select %p180, %s177, 3
        %p182 = scmp.lt.s32.totalorder %s18, 0
        %s183 = scalar_select %p182, %s18, 0
        %s184 = sadd.s32 %s183, %s181
        %s185 = smul.addr %s179, 4
        %s186 = sadd.s32 %s184, %s185
        %s187 = smul.addr %s186, 8
        %s188 = scalar_lea.vmem %s0, %s187
        %s189 = smul.u32 4, %s17
      $region20: #{causal_self_attention.4} parent=15 // pred_fallthru
        _
      // Predicated region
      $region21: #{causal_self_attention.4} parent=15 // pred_check
        %p190 = pneg %p89
      $region22: #{causal_self_attention.4} parent=15 // pred_check_branch
        %192 = sbr.rel (%p190) target = $region24
      $region23: #{causal_self_attention.4} parent=15 // pred_region
        %s193 = smul.u32 4, %s17
        %p194 = scmp.lt.s32.totalorder %s16, 1
        %s195 = scalar_select %p194, %s16, 1
        %p196 = scmp.lt.s32.totalorder %s193, 3
        %s197 = scalar_select %p196, %s193, 3
        %p198 = scmp.lt.s32.totalorder %s19, 0
        %s199 = scalar_select %p198, %s19, 0
        %s200 = sadd.s32 %s199, %s197
        %s201 = smul.addr %s195, 4
        %s202 = sadd.s32 %s200, %s201
        %s203 = smul.addr %s202, 8
        %s204 = scalar_lea.vmem %s1, %s203
        %s205 = smul.u32 4, %s17
      $region24: #{causal_self_attention.4} parent=15 // pred_fallthru
        _
      // Predicated region
      $region25: #{causal_self_attention.4} parent=15 // pred_check
        %p206 = pneg %p119
      $region26: #{causal_self_attention.4} parent=15 // pred_check_branch
        %208 = sbr.rel (%p206) target = $region28
      $region27: #{causal_self_attention.4} parent=15 // pred_region
        %s209 = smul.u32 4, %s17
        %p210 = scmp.lt.s32.totalorder %s16, 1
        %s211 = scalar_select %p210, %s16, 1
        %p212 = scmp.lt.s32.totalorder %s209, 3
        %s213 = scalar_select %p212, %s209, 3
        %p214 = scmp.lt.s32.totalorder %s19, 0
        %s215 = scalar_select %p214, %s19, 0
        %s216 = sadd.s32 %s215, %s213
        %s217 = smul.addr %s211, 4
        %s218 = sadd.s32 %s216, %s217
        %s219 = smul.addr %s218, 8
        %s220 = scalar_lea.vmem %s2, %s219
        %s221 = smul.u32 4, %s17
      $region28: #{causal_self_attention.4} parent=15 // pred_fallthru
        _
    $region16: #{causal_self_attention.4} parent=5 // pred_fallthru
      _
    %p222 = scmp.le.s32.totalorder 1, %s9
    %p223 = scmp.lt.s32.totalorder %s9, 3
    %p224 = pnand %p222, %p223
    %p225 = pneg %p224
    // Predicated region
    $region29: #{causal_self_attention.4} parent=5 // pred_check
      _
    $region30: #{causal_self_attention.4} parent=5 // pred_check_branch
      %227 = sbr.rel (%p224) target = $region32
    $region31: #{causal_self_attention.4} parent=5 // pred_region
      %s228 = ssub.s32 %s9, 1
      %s229 = smul.u32 4, %s21
      %p230 = scmp.lt.s32.totalorder %s20, 1
      %s231 = scalar_select %p230, %s20, 1
      %p232 = scmp.lt.s32.totalorder %s229, 3
      %s233 = scalar_select %p232, %s229, 3
      %p234 = scmp.lt.s32.totalorder %s22, 0
      %s235 = scalar_select %p234, %s22, 0
      %s236 = sadd.s32 %s235, %s233
      %s237 = smul.addr %s231, 4
      %s238 = sadd.s32 %s236, %s237
      %s239 = smul.addr %s238, 8
      %s240 = scalar_lea.vmem %s0, %s239
      %p241 = pneg %p65
      %p242 = pneg %p62
      %s243 = smul.u32 4, %s21
      %p244 = scmp.lt.s32.totalorder %s20, 1
      %s245 = scalar_select %p244, %s20, 1
      %p246 = scmp.lt.s32.totalorder %s243, 3
      %s247 = scalar_select %p246, %s243, 3
      %p248 = scmp.lt.s32.totalorder %s23, 0
      %s249 = scalar_select %p248, %s23, 0
      %s250 = sadd.s32 %s249, %s247
      %s251 = smul.addr %s245, 4
      %s252 = sadd.s32 %s250, %s251
      %s253 = smul.addr %s252, 8
      %s254 = scalar_lea.vmem %s1, %s253
      %p255 = pneg %p95
      %p256 = pneg %p92
      %s257 = smul.u32 4, %s21
      %p258 = scmp.lt.s32.totalorder %s20, 1
      %s259 = scalar_select %p258, %s20, 1
      %p260 = scmp.lt.s32.totalorder %s257, 3
      %s261 = scalar_select %p260, %s257, 3
      %p262 = scmp.lt.s32.totalorder %s23, 0
      %s263 = scalar_select %p262, %s23, 0
      %s264 = sadd.s32 %s263, %s261
      %s265 = smul.addr %s259, 4
      %s266 = sadd.s32 %s264, %s265
      %s267 = smul.addr %s266, 8
      %s268 = scalar_lea.vmem %s2, %s267
      %p269 = pneg %p125
      %p270 = pneg %p122
      %p271 = pneg %p155
      %p272 = pneg %p152
      %s273 = smul.u32 4, %s21
      %p274 = scmp.lt.s32.totalorder %s20, 1
      %s275 = scalar_select %p274, %s20, 1
      %p276 = scmp.lt.s32.totalorder %s273, 3
      %s277 = scalar_select %p276, %s273, 3
      %p278 = scmp.lt.s32.totalorder %s22, 0
      %s279 = scalar_select %p278, %s22, 0
      %s280 = sadd.s32 %s279, %s277
      %s281 = smul.addr %s275, 4
      %s282 = sadd.s32 %s280, %s281
      %s283 = smul.addr %s282, 8
      %s284 = scalar_lea.vmem %s3, %s283
      %s285 = smul.u32 4, %s21
      %p286 = scmp.lt.s32.totalorder %s20, 1
      %s287 = scalar_select %p286, %s20, 1
      %p288 = scmp.lt.s32.totalorder %s285, 3
      %s289 = scalar_select %p288, %s285, 3
      %p290 = scmp.lt.s32.totalorder %s22, 0
      %s291 = scalar_select %p290, %s22, 0
      %s292 = sadd.s32 %s291, %s289
      %s293 = smul.addr %s287, 4
      %s294 = sadd.s32 %s292, %s293
      %s295 = smul.addr %s294, 8
      %s296 = scalar_lea.vmem %s0, %s295
      %s297 = smul.u32 4, %s21
      %s298 = smul.u32 4, %s21
      %p299 = scmp.lt.s32.totalorder %s20, 1
      %s300 = scalar_select %p299, %s20, 1
      %p301 = scmp.lt.s32.totalorder %s298, 3
      %s302 = scalar_select %p301, %s298, 3
      %p303 = scmp.lt.s32.totalorder %s23, 0
      %s304 = scalar_select %p303, %s23, 0
      %s305 = sadd.s32 %s304, %s302
      %s306 = smul.addr %s300, 4
      %s307 = sadd.s32 %s305, %s306
      %s308 = smul.addr %s307, 8
      %s309 = scalar_lea.vmem %s1, %s308
      %s310 = smul.u32 4, %s21
      %s311 = smul.u32 4, %s21
      %p312 = scmp.lt.s32.totalorder %s20, 1
      %s313 = scalar_select %p312, %s20, 1
      %p314 = scmp.lt.s32.totalorder %s311, 3
      %s315 = scalar_select %p314, %s311, 3
      %p316 = scmp.lt.s32.totalorder %s23, 0
      %s317 = scalar_select %p316, %s23, 0
      %s318 = sadd.s32 %s317, %s315
      %s319 = smul.addr %s313, 4
      %s320 = sadd.s32 %s318, %s319
      %s321 = smul.addr %s320, 8
      %s322 = scalar_lea.vmem %s2, %s321
      %s323 = smul.u32 4, %s21
      %s324 = smul.u32 4, %s21
      %p325 = scmp.lt.s32.totalorder %s20, 1
      %s326 = scalar_select %p325, %s20, 1
      %p327 = scmp.lt.s32.totalorder %s324, 3
      %s328 = scalar_select %p327, %s324, 3
      %p329 = scmp.lt.s32.totalorder %s22, 0
      %s330 = scalar_select %p329, %s22, 0
      %s331 = sadd.s32 %s330, %s328
      %s332 = smul.addr %s326, 4
      %s333 = sadd.s32 %s331, %s332
      %s334 = smul.addr %s333, 8
      %s335 = scalar_lea.vmem %s3, %s334
      %s336 = smul.u32 4, %s21
      %p337 = scmp.eq.s32.totalorder %s23, 0
      // Predicated region
      $region33: #{causal_self_attention.4} parent=31 // pred_check
        %p338 = pneg %p337
      $region34: #{causal_self_attention.4} parent=31 // pred_check_branch
        %340 = sbr.rel (%p338) target = $region36
      $region35: #{causal_self_attention.4} parent=31 // pred_region
        %vm341 = vcmask 7168
        %342 = vst.msk [vmem:[#allocation2] sm:$0xff] %vm341, -inf
        %343 = vst.msk [vmem:[#allocation2 + $0x8] sm:$0xff] %vm341, -inf
        %344 = vst.msk [vmem:[#allocation2 + $0x10] sm:$0xff] %vm341, -inf
        %345 = vst.msk [vmem:[#allocation2 + $0x18] sm:$0xff] %vm341, -inf
        %346 = vst.msk [vmem:[#allocation3] sm:$0xff] %vm341, 0.0
        %347 = vst.msk [vmem:[#allocation3 + $0x8] sm:$0xff] %vm341, 0.0
        %348 = vst.msk [vmem:[#allocation3 + $0x10] sm:$0xff] %vm341, 0.0
        %349 = vst.msk [vmem:[#allocation3 + $0x18] sm:$0xff] %vm341, 0.0
        %vm350 = vcmask 64512
        %351 = vst.msk [vmem:[#allocation4] sm:$0xff] %vm350, 0.0
        %352 = vst.msk [vmem:[#allocation4 + $0x8] sm:$0xff] %vm350, 0.0
        %353 = vst.msk [vmem:[#allocation4 + $0x10] sm:$0xff] %vm350, 0.0
        %354 = vst.msk [vmem:[#allocation4 + $0x18] sm:$0xff] %vm350, 0.0
      $region36: #{causal_self_attention.4} parent=31 // pred_fallthru
        _
      %v355 = vld [vmem:[%s296] sm:$0xff]
      %v356 = vld [vmem:[%s296 + $0x8] sm:$0xff]
      %v357 = vld [vmem:[%s296 + $0x10] sm:$0xff]
      %v358 = vld [vmem:[%s296 + $0x18] sm:$0xff]
      %v359 = vld [vmem:[%s309] sm:$0xff]
      %v360 = vld [vmem:[%s309 + $0x8] sm:$0xff]
      %v361 = vld [vmem:[%s309 + $0x10] sm:$0xff]
      %v362 = vld [vmem:[%s309 + $0x18] sm:$0xff]
      %vm363 = vcmask 64512
      %v365 = vsel %vm363, %v355, 0
      %v368 = vsel %vm363, %v359, 0
      %370 = vmatprep.subr.mxu0 0.0
      %371 = vmatpush1.xpose.msra.mxu0 0.0
      %372 = vmatprep.subr.mxu0 0.0
      %373 = vmatpush1.xpose.msra.mxu0 0.0
      %374 = vmatprep.subr.mxu0 0.0
      %375 = vmatpush1.xpose.msra.mxu0 0.0
      %376 = vmatprep.subr.mxu0 0.0
      %377 = vmatpush1.xpose.msra.mxu0 0.0
      %378 = vmatprep.subr.mxu0 0.0
      %379 = vmatpush1.xpose.msra.mxu0 0.0
      %380 = vmatprep.subr.mxu0 0.0
      %381 = vmatpush1.xpose.msra.mxu0 0.0
      %382 = vmatprep.subr.mxu0 0.0
      %383 = vmatpush1.xpose.msra.mxu0 0.0
      %384 = vmatprep.subr.mxu0 0.0
      %385 = vmatpush1.xpose.msra.mxu0 0.0
      %386 = vmatprep.subr.mxu0 0.0
      %387 = vmatpush1.xpose.msra.mxu0 0.0
      %388 = vmatprep.subr.mxu0 0.0
      %389 = vmatpush1.xpose.msra.mxu0 0.0
      %390 = vmatprep.subr.mxu0 0.0
      %391 = vmatpush1.xpose.msra.mxu0 0.0
      %392 = vmatprep.subr.mxu0 0.0
      %393 = vmatpush1.xpose.msra.mxu0 0.0
      %394 = vmatprep.subr.mxu0 0.0
      %395 = vmatpush1.xpose.msra.mxu0 0.0
      %396 = vmatprep.subr.mxu0 0.0
      %397 = vmatpush1.xpose.msra.mxu0 0.0
      %398 = vmatprep.subr.mxu0 0.0
      %399 = vmatpush1.xpose.msra.mxu0 0.0
      %400 = vmatprep.subr.mxu0 0.0
      %401 = vmatpush1.xpose.msra.mxu0 %v368
      %402 = vmatprep.subr.mxu0 0.0
      %403 = vmatpush2.xpose.msra.mxu0 0.0
      %404 = vmatprep.subr.mxu0 0.0
      %405 = vmatpush2.xpose.msra.mxu0 0.0
      %406 = vmatprep.subr.mxu0 0.0
      %407 = vmatpush2.xpose.msra.mxu0 0.0
      %408 = vmatprep.subr.mxu0 0.0
      %409 = vmatpush2.xpose.msra.mxu0 0.0
      %410 = vmatprep.subr.mxu0 0.0
      %411 = vmatpush2.xpose.msra.mxu0 0.0
      %412 = vmatprep.subr.mxu0 0.0
      %413 = vmatpush2.xpose.msra.mxu0 0.0
      %414 = vmatprep.subr.mxu0 0.0
      %415 = vmatpush2.xpose.msra.mxu0 0.0
      %416 = vmatprep.subr.mxu0 0.0
      %417 = vmatpush2.xpose.msra.mxu0 0.0
      %418 = vmatprep.subr.mxu0 0.0
      %419 = vmatpush2.xpose.msra.mxu0 0.0
      %420 = vmatprep.subr.mxu0 0.0
      %421 = vmatpush2.xpose.msra.mxu0 0.0
      %422 = vmatprep.subr.mxu0 0.0
      %423 = vmatpush2.xpose.msra.mxu0 0.0
      %424 = vmatprep.subr.mxu0 0.0
      %425 = vmatpush2.xpose.msra.mxu0 0.0
      %426 = vmatprep.subr.mxu0 0.0
      %427 = vmatpush2.xpose.msra.mxu0 0.0
      %428 = vmatprep.subr.mxu0 0.0
      %429 = vmatpush2.xpose.msra.mxu0 0.0
      %430 = vmatprep.subr.mxu0 0.0
      %431 = vmatpush2.xpose.msra.mxu0 0.0
      %432 = vmatprep.subr.mxu0 0.0
      %433 = vmatpush2.xpose.msra.mxu0 0.0
      %434 = vmatprep.mubr.f32.mxu0 0.0
      %435 = vmatmul.mubr.f32.gmra.mxu0 %v365
      %v436 = vpop.f32.mrf.mxu0
      %v437 = vadd.f32 0.0, %v436
      %v438 = vpop.f32.mrf.mxu0
      %439 = vdwg.mxu0
      %v441 = vsel %vm363, %v356, 0
      %v444 = vsel %vm363, %v360, 0
      %446 = vmatprep.subr.mxu0 0.0
      %447 = vmatpush1.xpose.msra.mxu0 0.0
      %448 = vmatprep.subr.mxu0 0.0
      %449 = vmatpush1.xpose.msra.mxu0 0.0
      %450 = vmatprep.subr.mxu0 0.0
      %451 = vmatpush1.xpose.msra.mxu0 0.0
      %452 = vmatprep.subr.mxu0 0.0
      %453 = vmatpush1.xpose.msra.mxu0 0.0
      %454 = vmatprep.subr.mxu0 0.0
      %455 = vmatpush1.xpose.msra.mxu0 0.0
      %456 = vmatprep.subr.mxu0 0.0
      %457 = vmatpush1.xpose.msra.mxu0 0.0
      %458 = vmatprep.subr.mxu0 0.0
      %459 = vmatpush1.xpose.msra.mxu0 0.0
      %460 = vmatprep.subr.mxu0 0.0
      %461 = vmatpush1.xpose.msra.mxu0 0.0
      %462 = vmatprep.subr.mxu0 0.0
      %463 = vmatpush1.xpose.msra.mxu0 0.0
      %464 = vmatprep.subr.mxu0 0.0
      %465 = vmatpush1.xpose.msra.mxu0 0.0
      %466 = vmatprep.subr.mxu0 0.0
      %467 = vmatpush1.xpose.msra.mxu0 0.0
      %468 = vmatprep.subr.mxu0 0.0
      %469 = vmatpush1.xpose.msra.mxu0 0.0
      %470 = vmatprep.subr.mxu0 0.0
      %471 = vmatpush1.xpose.msra.mxu0 0.0
      %472 = vmatprep.subr.mxu0 0.0
      %473 = vmatpush1.xpose.msra.mxu0 0.0
      %474 = vmatprep.subr.mxu0 0.0
      %475 = vmatpush1.xpose.msra.mxu0 0.0
      %476 = vmatprep.subr.mxu0 0.0
      %477 = vmatpush1.xpose.msra.mxu0 %v444
      %478 = vmatprep.subr.mxu0 0.0
      %479 = vmatpush2.xpose.msra.mxu0 0.0
      %480 = vmatprep.subr.mxu0 0.0
      %481 = vmatpush2.xpose.msra.mxu0 0.0
      %482 = vmatprep.subr.mxu0 0.0
      %483 = vmatpush2.xpose.msra.mxu0 0.0
      %484 = vmatprep.subr.mxu0 0.0
      %485 = vmatpush2.xpose.msra.mxu0 0.0
      %486 = vmatprep.subr.mxu0 0.0
      %487 = vmatpush2.xpose.msra.mxu0 0.0
      %488 = vmatprep.subr.mxu0 0.0
      %489 = vmatpush2.xpose.msra.mxu0 0.0
      %490 = vmatprep.subr.mxu0 0.0
      %491 = vmatpush2.xpose.msra.mxu0 0.0
      %492 = vmatprep.subr.mxu0 0.0
      %493 = vmatpush2.xpose.msra.mxu0 0.0
      %494 = vmatprep.subr.mxu0 0.0
      %495 = vmatpush2.xpose.msra.mxu0 0.0
      %496 = vmatprep.subr.mxu0 0.0
      %497 = vmatpush2.xpose.msra.mxu0 0.0
      %498 = vmatprep.subr.mxu0 0.0
      %499 = vmatpush2.xpose.msra.mxu0 0.0
      %500 = vmatprep.subr.mxu0 0.0
      %501 = vmatpush2.xpose.msra.mxu0 0.0
      %502 = vmatprep.subr.mxu0 0.0
      %503 = vmatpush2.xpose.msra.mxu0 0.0
      %504 = vmatprep.subr.mxu0 0.0
      %505 = vmatpush2.xpose.msra.mxu0 0.0
      %506 = vmatprep.subr.mxu0 0.0
      %507 = vmatpush2.xpose.msra.mxu0 0.0
      %508 = vmatprep.subr.mxu0 0.0
      %509 = vmatpush2.xpose.msra.mxu0 0.0
      %510 = vmatprep.mubr.f32.mxu0 0.0
      %511 = vmatmul.mubr.f32.gmra.mxu0 %v441
      %v512 = vpop.f32.mrf.mxu0
      %v513 = vadd.f32 0.0, %v512
      %v514 = vpop.f32.mrf.mxu0
      %515 = vdwg.mxu0
      %v517 = vsel %vm363, %v357, 0
      %v520 = vsel %vm363, %v361, 0
      %522 = vmatprep.subr.mxu0 0.0
      %523 = vmatpush1.xpose.msra.mxu0 0.0
      %524 = vmatprep.subr.mxu0 0.0
      %525 = vmatpush1.xpose.msra.mxu0 0.0
      %526 = vmatprep.subr.mxu0 0.0
      %527 = vmatpush1.xpose.msra.mxu0 0.0
      %528 = vmatprep.subr.mxu0 0.0
      %529 = vmatpush1.xpose.msra.mxu0 0.0
      %530 = vmatprep.subr.mxu0 0.0
      %531 = vmatpush1.xpose.msra.mxu0 0.0
      %532 = vmatprep.subr.mxu0 0.0
      %533 = vmatpush1.xpose.msra.mxu0 0.0
      %534 = vmatprep.subr.mxu0 0.0
      %535 = vmatpush1.xpose.msra.mxu0 0.0
      %536 = vmatprep.subr.mxu0 0.0
      %537 = vmatpush1.xpose.msra.mxu0 0.0
      %538 = vmatprep.subr.mxu0 0.0
      %539 = vmatpush1.xpose.msra.mxu0 0.0
      %540 = vmatprep.subr.mxu0 0.0
      %541 = vmatpush1.xpose.msra.mxu0 0.0
      %542 = vmatprep.subr.mxu0 0.0
      %543 = vmatpush1.xpose.msra.mxu0 0.0
      %544 = vmatprep.subr.mxu0 0.0
      %545 = vmatpush1.xpose.msra.mxu0 0.0
      %546 = vmatprep.subr.mxu0 0.0
      %547 = vmatpush1.xpose.msra.mxu0 0.0
      %548 = vmatprep.subr.mxu0 0.0
      %549 = vmatpush1.xpose.msra.mxu0 0.0
      %550 = vmatprep.subr.mxu0 0.0
      %551 = vmatpush1.xpose.msra.mxu0 0.0
      %552 = vmatprep.subr.mxu0 0.0
      %553 = vmatpush1.xpose.msra.mxu0 %v520
      %554 = vmatprep.subr.mxu0 0.0
      %555 = vmatpush2.xpose.msra.mxu0 0.0
      %556 = vmatprep.subr.mxu0 0.0
      %557 = vmatpush2.xpose.msra.mxu0 0.0
      %558 = vmatprep.subr.mxu0 0.0
      %559 = vmatpush2.xpose.msra.mxu0 0.0
      %560 = vmatprep.subr.mxu0 0.0
      %561 = vmatpush2.xpose.msra.mxu0 0.0
      %562 = vmatprep.subr.mxu0 0.0
      %563 = vmatpush2.xpose.msra.mxu0 0.0
      %564 = vmatprep.subr.mxu0 0.0
      %565 = vmatpush2.xpose.msra.mxu0 0.0
      %566 = vmatprep.subr.mxu0 0.0
      %567 = vmatpush2.xpose.msra.mxu0 0.0
      %568 = vmatprep.subr.mxu0 0.0
      %569 = vmatpush2.xpose.msra.mxu0 0.0
      %570 = vmatprep.subr.mxu0 0.0
      %571 = vmatpush2.xpose.msra.mxu0 0.0
      %572 = vmatprep.subr.mxu0 0.0
      %573 = vmatpush2.xpose.msra.mxu0 0.0
      %574 = vmatprep.subr.mxu0 0.0
      %575 = vmatpush2.xpose.msra.mxu0 0.0
      %576 = vmatprep.subr.mxu0 0.0
      %577 = vmatpush2.xpose.msra.mxu0 0.0
      %578 = vmatprep.subr.mxu0 0.0
      %579 = vmatpush2.xpose.msra.mxu0 0.0
      %580 = vmatprep.subr.mxu0 0.0
      %581 = vmatpush2.xpose.msra.mxu0 0.0
      %582 = vmatprep.subr.mxu0 0.0
      %583 = vmatpush2.xpose.msra.mxu0 0.0
      %584 = vmatprep.subr.mxu0 0.0
      %585 = vmatpush2.xpose.msra.mxu0 0.0
      %586 = vmatprep.mubr.f32.mxu0 0.0
      %587 = vmatmul.mubr.f32.gmra.mxu0 %v517
      %v588 = vpop.f32.mrf.mxu0
      %v589 = vadd.f32 0.0, %v588
      %v590 = vpop.f32.mrf.mxu0
      %591 = vdwg.mxu0
      %v593 = vsel %vm363, %v358, 0
      %v596 = vsel %vm363, %v362, 0
      %598 = vmatprep.subr.mxu0 0.0
      %599 = vmatpush1.xpose.msra.mxu0 0.0
      %600 = vmatprep.subr.mxu0 0.0
      %601 = vmatpush1.xpose.msra.mxu0 0.0
      %602 = vmatprep.subr.mxu0 0.0
      %603 = vmatpush1.xpose.msra.mxu0 0.0
      %604 = vmatprep.subr.mxu0 0.0
      %605 = vmatpush1.xpose.msra.mxu0 0.0
      %606 = vmatprep.subr.mxu0 0.0
      %607 = vmatpush1.xpose.msra.mxu0 0.0
      %608 = vmatprep.subr.mxu0 0.0
      %609 = vmatpush1.xpose.msra.mxu0 0.0
      %610 = vmatprep.subr.mxu0 0.0
      %611 = vmatpush1.xpose.msra.mxu0 0.0
      %612 = vmatprep.subr.mxu0 0.0
      %613 = vmatpush1.xpose.msra.mxu0 0.0
      %614 = vmatprep.subr.mxu0 0.0
      %615 = vmatpush1.xpose.msra.mxu0 0.0
      %616 = vmatprep.subr.mxu0 0.0
      %617 = vmatpush1.xpose.msra.mxu0 0.0
      %618 = vmatprep.subr.mxu0 0.0
      %619 = vmatpush1.xpose.msra.mxu0 0.0
      %620 = vmatprep.subr.mxu0 0.0
      %621 = vmatpush1.xpose.msra.mxu0 0.0
      %622 = vmatprep.subr.mxu0 0.0
      %623 = vmatpush1.xpose.msra.mxu0 0.0
      %624 = vmatprep.subr.mxu0 0.0
      %625 = vmatpush1.xpose.msra.mxu0 0.0
      %626 = vmatprep.subr.mxu0 0.0
      %627 = vmatpush1.xpose.msra.mxu0 0.0
      %628 = vmatprep.subr.mxu0 0.0
      %629 = vmatpush1.xpose.msra.mxu0 %v596
      %630 = vmatprep.subr.mxu0 0.0
      %631 = vmatpush2.xpose.msra.mxu0 0.0
      %632 = vmatprep.subr.mxu0 0.0
      %633 = vmatpush2.xpose.msra.mxu0 0.0
      %634 = vmatprep.subr.mxu0 0.0
      %635 = vmatpush2.xpose.msra.mxu0 0.0
      %636 = vmatprep.subr.mxu0 0.0
      %637 = vmatpush2.xpose.msra.mxu0 0.0
      %638 = vmatprep.subr.mxu0 0.0
      %639 = vmatpush2.xpose.msra.mxu0 0.0
      %640 = vmatprep.subr.mxu0 0.0
      %641 = vmatpush2.xpose.msra.mxu0 0.0
      %642 = vmatprep.subr.mxu0 0.0
      %643 = vmatpush2.xpose.msra.mxu0 0.0
      %644 = vmatprep.subr.mxu0 0.0
      %645 = vmatpush2.xpose.msra.mxu0 0.0
      %646 = vmatprep.subr.mxu0 0.0
      %647 = vmatpush2.xpose.msra.mxu0 0.0
      %648 = vmatprep.subr.mxu0 0.0
      %649 = vmatpush2.xpose.msra.mxu0 0.0
      %650 = vmatprep.subr.mxu0 0.0
      %651 = vmatpush2.xpose.msra.mxu0 0.0
      %652 = vmatprep.subr.mxu0 0.0
      %653 = vmatpush2.xpose.msra.mxu0 0.0
      %654 = vmatprep.subr.mxu0 0.0
      %655 = vmatpush2.xpose.msra.mxu0 0.0
      %656 = vmatprep.subr.mxu0 0.0
      %657 = vmatpush2.xpose.msra.mxu0 0.0
      %658 = vmatprep.subr.mxu0 0.0
      %659 = vmatpush2.xpose.msra.mxu0 0.0
      %660 = vmatprep.subr.mxu0 0.0
      %661 = vmatpush2.xpose.msra.mxu0 0.0
      %662 = vmatprep.mubr.f32.mxu0 0.0
      %663 = vmatmul.mubr.f32.gmra.mxu0 %v593
      %v664 = vpop.f32.mrf.mxu0
      %v665 = vadd.f32 0.0, %v664
      %v666 = vpop.f32.mrf.mxu0
      %667 = vdwg.mxu0
      %v668 = vld [vmem:[#allocation2] sm:$0xff]
      %v669 = vld [vmem:[#allocation2 + $0x8] sm:$0xff]
      %v670 = vld [vmem:[#allocation2 + $0x10] sm:$0xff]
      %v671 = vld [vmem:[#allocation2 + $0x18] sm:$0xff]
      %v672 = vsel %vm363, %v437, -inf
      %673 = vmax.xlane.f32.xlu0 %v672
      %v674 = vpop.xlane.xlu0 %673
      %v675 = vsel %vm363, %v513, -inf
      %676 = vmax.xlane.f32.xlu0 %v675
      %v677 = vpop.xlane.xlu0 %676
      %v678 = vsel %vm363, %v589, -inf
      %679 = vmax.xlane.f32.xlu0 %v678
      %v680 = vpop.xlane.xlu0 %679
      %v681 = vsel %vm363, %v665, -inf
      %682 = vmax.xlane.f32.xlu0 %v681
      %v683 = vpop.xlane.xlu0 %682
      %v684 = vmax.f32 %v668, %v674
      %v685 = vmax.f32 %v669, %v677
      %v686 = vmax.f32 %v670, %v680
      %v687 = vmax.f32 %v671, %v683
      %v688 = vsub.f32 %v668, %v684
      %v689 = vsub.f32 %v669, %v685
      %v690 = vsub.f32 %v670, %v686
      %v691 = vsub.f32 %v671, %v687
      %v692 = vmul.f32 %v688, 1.442695
      %v693 = vpow.pop %v692
      %v694 = vmul.f32 %v689, 1.442695
      %v695 = vpow.pop %v694
      %v696 = vmul.f32 %v690, 1.442695
      %v697 = vpow.pop %v696
      %v698 = vmul.f32 %v691, 1.442695
      %v699 = vpow.pop %v698
      %701 = vset.pattern.permute.xlu0 0
      %702 = vperm.xlu0 %701, %v684
      %v703 = vpop.permute.xlu0 %702
      %706 = vset.pattern.permute.xlu0 0
      %707 = vperm.xlu0 %706, %v685
      %v708 = vpop.permute.xlu0 %707
      %711 = vset.pattern.permute.xlu0 0
      %712 = vperm.xlu0 %711, %v686
      %v713 = vpop.permute.xlu0 %712
      %716 = vset.pattern.permute.xlu0 0
      %717 = vperm.xlu0 %716, %v687
      %v718 = vpop.permute.xlu0 %717
      %v720 = vsub.f32 %v437, %v703
      %v721 = vsub.f32 %v513, %v708
      %v722 = vsub.f32 %v589, %v713
      %v723 = vsub.f32 %v665, %v718
      %v724 = vmul.f32 %v720, 1.442695
      %v725 = vpow.pop %v724
      %v726 = vmul.f32 %v721, 1.442695
      %v727 = vpow.pop %v726
      %v728 = vmul.f32 %v722, 1.442695
      %v729 = vpow.pop %v728
      %v730 = vmul.f32 %v723, 1.442695
      %v731 = vpow.pop %v730
      %v732 = vld [vmem:[#allocation3] sm:$0xff]
      %v733 = vld [vmem:[#allocation3 + $0x8] sm:$0xff]
      %v734 = vld [vmem:[#allocation3 + $0x10] sm:$0xff]
      %v735 = vld [vmem:[#allocation3 + $0x18] sm:$0xff]
      %v736 = vmul.f32 %v693, %v732
      %v737 = vmul.f32 %v695, %v733
      %v738 = vmul.f32 %v697, %v734
      %v739 = vmul.f32 %v699, %v735
      %v740 = vsel %vm363, %v725, 0.0
      %741 = vadd.xlane.f32.xlu0 %v740
      %v742 = vpop.xlane.xlu0 %741
      %v743 = vsel %vm363, %v727, 0.0
      %744 = vadd.xlane.f32.xlu0 %v743
      %v745 = vpop.xlane.xlu0 %744
      %v746 = vsel %vm363, %v729, 0.0
      %747 = vadd.xlane.f32.xlu0 %v746
      %v748 = vpop.xlane.xlu0 %747
      %v749 = vsel %vm363, %v731, 0.0
      %750 = vadd.xlane.f32.xlu0 %v749
      %v751 = vpop.xlane.xlu0 %750
      %v752 = vadd.f32 %v736, %v742
      %v753 = vadd.f32 %v737, %v745
      %v754 = vadd.f32 %v738, %v748
      %v755 = vadd.f32 %v739, %v751
      %vm756 = vcmask 7168
      %757 = vst.msk [vmem:[#allocation3] sm:$0xff] %vm756, %v752
      %758 = vst.msk [vmem:[#allocation3 + $0x8] sm:$0xff] %vm756, %v753
      %759 = vst.msk [vmem:[#allocation3 + $0x10] sm:$0xff] %vm756, %v754
      %760 = vst.msk [vmem:[#allocation3 + $0x18] sm:$0xff] %vm756, %v755
      %v761 = vld [vmem:[#allocation4] sm:$0xff]
      %v762 = vld [vmem:[#allocation4 + $0x8] sm:$0xff]
      %v763 = vld [vmem:[#allocation4 + $0x10] sm:$0xff]
      %v764 = vld [vmem:[#allocation4 + $0x18] sm:$0xff]
      %766 = vset.pattern.permute.xlu0 0
      %767 = vperm.xlu0 %766, %v693
      %v768 = vpop.permute.xlu0 %767
      %771 = vset.pattern.permute.xlu0 0
      %772 = vperm.xlu0 %771, %v695
      %v773 = vpop.permute.xlu0 %772
      %776 = vset.pattern.permute.xlu0 0
      %777 = vperm.xlu0 %776, %v697
      %v778 = vpop.permute.xlu0 %777
      %781 = vset.pattern.permute.xlu0 0
      %782 = vperm.xlu0 %781, %v699
      %v783 = vpop.permute.xlu0 %782
      %v785 = vmul.f32 %v768, %v761
      %v786 = vmul.f32 %v773, %v762
      %v787 = vmul.f32 %v778, %v763
      %v788 = vmul.f32 %v783, %v764
      %v789 = vld [vmem:[%s322] sm:$0xff]
      %v790 = vld [vmem:[%s322 + $0x8] sm:$0xff]
      %v791 = vld [vmem:[%s322 + $0x10] sm:$0xff]
      %v792 = vld [vmem:[%s322 + $0x18] sm:$0xff]
      %v794 = vsel %vm363, %v725, 0
      %796 = vmatprep.subr.mxu0 0.0
      %797 = vmatpush1.msra.mxu0 0.0
      %798 = vmatprep.subr.mxu0 0.0
      %799 = vmatpush1.msra.mxu0 0.0
      %800 = vmatprep.subr.mxu0 0.0
      %801 = vmatpush1.msra.mxu0 0.0
      %802 = vmatprep.subr.mxu0 0.0
      %803 = vmatpush1.msra.mxu0 0.0
      %804 = vmatprep.subr.mxu0 0.0
      %805 = vmatpush1.msra.mxu0 0.0
      %806 = vmatprep.subr.mxu0 0.0
      %807 = vmatpush1.msra.mxu0 0.0
      %808 = vmatprep.subr.mxu0 0.0
      %809 = vmatpush1.msra.mxu0 0.0
      %810 = vmatprep.subr.mxu0 0.0
      %811 = vmatpush1.msra.mxu0 0.0
      %812 = vmatprep.subr.mxu0 0.0
      %813 = vmatpush1.msra.mxu0 0.0
      %814 = vmatprep.subr.mxu0 0.0
      %815 = vmatpush1.msra.mxu0 0.0
      %816 = vmatprep.subr.mxu0 0.0
      %817 = vmatpush1.msra.mxu0 0.0
      %818 = vmatprep.subr.mxu0 0.0
      %819 = vmatpush1.msra.mxu0 0.0
      %820 = vmatprep.subr.mxu0 0.0
      %821 = vmatpush1.msra.mxu0 0.0
      %822 = vmatprep.subr.mxu0 0.0
      %823 = vmatpush1.msra.mxu0 0.0
      %824 = vmatprep.subr.mxu0 0.0
      %825 = vmatpush1.msra.mxu0 0.0
      %826 = vmatprep.subr.mxu0 0.0
      %827 = vmatpush1.msra.mxu0 %v789
      %828 = vmatprep.subr.mxu0 0.0
      %829 = vmatpush2.msra.mxu0 0.0
      %830 = vmatprep.subr.mxu0 0.0
      %831 = vmatpush2.msra.mxu0 0.0
      %832 = vmatprep.subr.mxu0 0.0
      %833 = vmatpush2.msra.mxu0 0.0
      %834 = vmatprep.subr.mxu0 0.0
      %835 = vmatpush2.msra.mxu0 0.0
      %836 = vmatprep.subr.mxu0 0.0
      %837 = vmatpush2.msra.mxu0 0.0
      %838 = vmatprep.subr.mxu0 0.0
      %839 = vmatpush2.msra.mxu0 0.0
      %840 = vmatprep.subr.mxu0 0.0
      %841 = vmatpush2.msra.mxu0 0.0
      %842 = vmatprep.subr.mxu0 0.0
      %843 = vmatpush2.msra.mxu0 0.0
      %844 = vmatprep.subr.mxu0 0.0
      %845 = vmatpush2.msra.mxu0 0.0
      %846 = vmatprep.subr.mxu0 0.0
      %847 = vmatpush2.msra.mxu0 0.0
      %848 = vmatprep.subr.mxu0 0.0
      %849 = vmatpush2.msra.mxu0 0.0
      %850 = vmatprep.subr.mxu0 0.0
      %851 = vmatpush2.msra.mxu0 0.0
      %852 = vmatprep.subr.mxu0 0.0
      %853 = vmatpush2.msra.mxu0 0.0
      %854 = vmatprep.subr.mxu0 0.0
      %855 = vmatpush2.msra.mxu0 0.0
      %856 = vmatprep.subr.mxu0 0.0
      %857 = vmatpush2.msra.mxu0 0.0
      %858 = vmatprep.subr.mxu0 0.0
      %859 = vmatpush2.msra.mxu0 0.0
      %860 = vmatprep.mubr.f32.mxu0 0.0
      %861 = vmatmul.mubr.f32.gmra.mxu0 %v794
      %v862 = vpop.f32.mrf.mxu0
      %v863 = vadd.f32 0.0, %v862
      %v864 = vpop.f32.mrf.mxu0
      %865 = vdwg.mxu0
      %v867 = vsel %vm363, %v727, 0
      %869 = vmatprep.subr.mxu0 0.0
      %870 = vmatpush1.msra.mxu0 0.0
      %871 = vmatprep.subr.mxu0 0.0
      %872 = vmatpush1.msra.mxu0 0.0
      %873 = vmatprep.subr.mxu0 0.0
      %874 = vmatpush1.msra.mxu0 0.0
      %875 = vmatprep.subr.mxu0 0.0
      %876 = vmatpush1.msra.mxu0 0.0
      %877 = vmatprep.subr.mxu0 0.0
      %878 = vmatpush1.msra.mxu0 0.0
      %879 = vmatprep.subr.mxu0 0.0
      %880 = vmatpush1.msra.mxu0 0.0
      %881 = vmatprep.subr.mxu0 0.0
      %882 = vmatpush1.msra.mxu0 0.0
      %883 = vmatprep.subr.mxu0 0.0
      %884 = vmatpush1.msra.mxu0 0.0
      %885 = vmatprep.subr.mxu0 0.0
      %886 = vmatpush1.msra.mxu0 0.0
      %887 = vmatprep.subr.mxu0 0.0
      %888 = vmatpush1.msra.mxu0 0.0
      %889 = vmatprep.subr.mxu0 0.0
      %890 = vmatpush1.msra.mxu0 0.0
      %891 = vmatprep.subr.mxu0 0.0
      %892 = vmatpush1.msra.mxu0 0.0
      %893 = vmatprep.subr.mxu0 0.0
      %894 = vmatpush1.msra.mxu0 0.0
      %895 = vmatprep.subr.mxu0 0.0
      %896 = vmatpush1.msra.mxu0 0.0
      %897 = vmatprep.subr.mxu0 0.0
      %898 = vmatpush1.msra.mxu0 0.0
      %899 = vmatprep.subr.mxu0 0.0
      %900 = vmatpush1.msra.mxu0 %v790
      %901 = vmatprep.subr.mxu0 0.0
      %902 = vmatpush2.msra.mxu0 0.0
      %903 = vmatprep.subr.mxu0 0.0
      %904 = vmatpush2.msra.mxu0 0.0
      %905 = vmatprep.subr.mxu0 0.0
      %906 = vmatpush2.msra.mxu0 0.0
      %907 = vmatprep.subr.mxu0 0.0
      %908 = vmatpush2.msra.mxu0 0.0
      %909 = vmatprep.subr.mxu0 0.0
      %910 = vmatpush2.msra.mxu0 0.0
      %911 = vmatprep.subr.mxu0 0.0
      %912 = vmatpush2.msra.mxu0 0.0
      %913 = vmatprep.subr.mxu0 0.0
      %914 = vmatpush2.msra.mxu0 0.0
      %915 = vmatprep.subr.mxu0 0.0
      %916 = vmatpush2.msra.mxu0 0.0
      %917 = vmatprep.subr.mxu0 0.0
      %918 = vmatpush2.msra.mxu0 0.0
      %919 = vmatprep.subr.mxu0 0.0
      %920 = vmatpush2.msra.mxu0 0.0
      %921 = vmatprep.subr.mxu0 0.0
      %922 = vmatpush2.msra.mxu0 0.0
      %923 = vmatprep.subr.mxu0 0.0
      %924 = vmatpush2.msra.mxu0 0.0
      %925 = vmatprep.subr.mxu0 0.0
      %926 = vmatpush2.msra.mxu0 0.0
      %927 = vmatprep.subr.mxu0 0.0
      %928 = vmatpush2.msra.mxu0 0.0
      %929 = vmatprep.subr.mxu0 0.0
      %930 = vmatpush2.msra.mxu0 0.0
      %931 = vmatprep.subr.mxu0 0.0
      %932 = vmatpush2.msra.mxu0 0.0
      %933 = vmatprep.mubr.f32.mxu0 0.0
      %934 = vmatmul.mubr.f32.gmra.mxu0 %v867
      %v935 = vpop.f32.mrf.mxu0
      %v936 = vadd.f32 0.0, %v935
      %v937 = vpop.f32.mrf.mxu0
      %938 = vdwg.mxu0
      %v940 = vsel %vm363, %v729, 0
      %942 = vmatprep.subr.mxu0 0.0
      %943 = vmatpush1.msra.mxu0 0.0
      %944 = vmatprep.subr.mxu0 0.0
      %945 = vmatpush1.msra.mxu0 0.0
      %946 = vmatprep.subr.mxu0 0.0
      %947 = vmatpush1.msra.mxu0 0.0
      %948 = vmatprep.subr.mxu0 0.0
      %949 = vmatpush1.msra.mxu0 0.0
      %950 = vmatprep.subr.mxu0 0.0
      %951 = vmatpush1.msra.mxu0 0.0
      %952 = vmatprep.subr.mxu0 0.0
      %953 = vmatpush1.msra.mxu0 0.0
      %954 = vmatprep.subr.mxu0 0.0
      %955 = vmatpush1.msra.mxu0 0.0
      %956 = vmatprep.subr.mxu0 0.0
      %957 = vmatpush1.msra.mxu0 0.0
      %958 = vmatprep.subr.mxu0 0.0
      %959 = vmatpush1.msra.mxu0 0.0
      %960 = vmatprep.subr.mxu0 0.0
      %961 = vmatpush1.msra.mxu0 0.0
      %962 = vmatprep.subr.mxu0 0.0
      %963 = vmatpush1.msra.mxu0 0.0
      %964 = vmatprep.subr.mxu0 0.0
      %965 = vmatpush1.msra.mxu0 0.0
      %966 = vmatprep.subr.mxu0 0.0
      %967 = vmatpush1.msra.mxu0 0.0
      %968 = vmatprep.subr.mxu0 0.0
      %969 = vmatpush1.msra.mxu0 0.0
      %970 = vmatprep.subr.mxu0 0.0
      %971 = vmatpush1.msra.mxu0 0.0
      %972 = vmatprep.subr.mxu0 0.0
      %973 = vmatpush1.msra.mxu0 %v791
      %974 = vmatprep.subr.mxu0 0.0
      %975 = vmatpush2.msra.mxu0 0.0
      %976 = vmatprep.subr.mxu0 0.0
      %977 = vmatpush2.msra.mxu0 0.0
      %978 = vmatprep.subr.mxu0 0.0
      %979 = vmatpush2.msra.mxu0 0.0
      %980 = vmatprep.subr.mxu0 0.0
      %981 = vmatpush2.msra.mxu0 0.0
      %982 = vmatprep.subr.mxu0 0.0
      %983 = vmatpush2.msra.mxu0 0.0
      %984 = vmatprep.subr.mxu0 0.0
      %985 = vmatpush2.msra.mxu0 0.0
      %986 = vmatprep.subr.mxu0 0.0
      %987 = vmatpush2.msra.mxu0 0.0
      %988 = vmatprep.subr.mxu0 0.0
      %989 = vmatpush2.msra.mxu0 0.0
      %990 = vmatprep.subr.mxu0 0.0
      %991 = vmatpush2.msra.mxu0 0.0
      %992 = vmatprep.subr.mxu0 0.0
      %993 = vmatpush2.msra.mxu0 0.0
      %994 = vmatprep.subr.mxu0 0.0
      %995 = vmatpush2.msra.mxu0 0.0
      %996 = vmatprep.subr.mxu0 0.0
      %997 = vmatpush2.msra.mxu0 0.0
      %998 = vmatprep.subr.mxu0 0.0
      %999 = vmatpush2.msra.mxu0 0.0
      %1000 = vmatprep.subr.mxu0 0.0
      %1001 = vmatpush2.msra.mxu0 0.0
      %1002 = vmatprep.subr.mxu0 0.0
      %1003 = vmatpush2.msra.mxu0 0.0
      %1004 = vmatprep.subr.mxu0 0.0
      %1005 = vmatpush2.msra.mxu0 0.0
      %1006 = vmatprep.mubr.f32.mxu0 0.0
      %1007 = vmatmul.mubr.f32.gmra.mxu0 %v940
      %v1008 = vpop.f32.mrf.mxu0
      %v1009 = vadd.f32 0.0, %v1008
      %v1010 = vpop.f32.mrf.mxu0
      %1011 = vdwg.mxu0
      %v1013 = vsel %vm363, %v731, 0
      %1015 = vmatprep.subr.mxu0 0.0
      %1016 = vmatpush1.msra.mxu0 0.0
      %1017 = vmatprep.subr.mxu0 0.0
      %1018 = vmatpush1.msra.mxu0 0.0
      %1019 = vmatprep.subr.mxu0 0.0
      %1020 = vmatpush1.msra.mxu0 0.0
      %1021 = vmatprep.subr.mxu0 0.0
      %1022 = vmatpush1.msra.mxu0 0.0
      %1023 = vmatprep.subr.mxu0 0.0
      %1024 = vmatpush1.msra.mxu0 0.0
      %1025 = vmatprep.subr.mxu0 0.0
      %1026 = vmatpush1.msra.mxu0 0.0
      %1027 = vmatprep.subr.mxu0 0.0
      %1028 = vmatpush1.msra.mxu0 0.0
      %1029 = vmatprep.subr.mxu0 0.0
      %1030 = vmatpush1.msra.mxu0 0.0
      %1031 = vmatprep.subr.mxu0 0.0
      %1032 = vmatpush1.msra.mxu0 0.0
      %1033 = vmatprep.subr.mxu0 0.0
      %1034 = vmatpush1.msra.mxu0 0.0
      %1035 = vmatprep.subr.mxu0 0.0
      %1036 = vmatpush1.msra.mxu0 0.0
      %1037 = vmatprep.subr.mxu0 0.0
      %1038 = vmatpush1.msra.mxu0 0.0
      %1039 = vmatprep.subr.mxu0 0.0
      %1040 = vmatpush1.msra.mxu0 0.0
      %1041 = vmatprep.subr.mxu0 0.0
      %1042 = vmatpush1.msra.mxu0 0.0
      %1043 = vmatprep.subr.mxu0 0.0
      %1044 = vmatpush1.msra.mxu0 0.0
      %1045 = vmatprep.subr.mxu0 0.0
      %1046 = vmatpush1.msra.mxu0 %v792
      %1047 = vmatprep.subr.mxu0 0.0
      %1048 = vmatpush2.msra.mxu0 0.0
      %1049 = vmatprep.subr.mxu0 0.0
      %1050 = vmatpush2.msra.mxu0 0.0
      %1051 = vmatprep.subr.mxu0 0.0
      %1052 = vmatpush2.msra.mxu0 0.0
      %1053 = vmatprep.subr.mxu0 0.0
      %1054 = vmatpush2.msra.mxu0 0.0
      %1055 = vmatprep.subr.mxu0 0.0
      %1056 = vmatpush2.msra.mxu0 0.0
      %1057 = vmatprep.subr.mxu0 0.0
      %1058 = vmatpush2.msra.mxu0 0.0
      %1059 = vmatprep.subr.mxu0 0.0
      %1060 = vmatpush2.msra.mxu0 0.0
      %1061 = vmatprep.subr.mxu0 0.0
      %1062 = vmatpush2.msra.mxu0 0.0
      %1063 = vmatprep.subr.mxu0 0.0
      %1064 = vmatpush2.msra.mxu0 0.0
      %1065 = vmatprep.subr.mxu0 0.0
      %1066 = vmatpush2.msra.mxu0 0.0
      %1067 = vmatprep.subr.mxu0 0.0
      %1068 = vmatpush2.msra.mxu0 0.0
      %1069 = vmatprep.subr.mxu0 0.0
      %1070 = vmatpush2.msra.mxu0 0.0
      %1071 = vmatprep.subr.mxu0 0.0
      %1072 = vmatpush2.msra.mxu0 0.0
      %1073 = vmatprep.subr.mxu0 0.0
      %1074 = vmatpush2.msra.mxu0 0.0
      %1075 = vmatprep.subr.mxu0 0.0
      %1076 = vmatpush2.msra.mxu0 0.0
      %1077 = vmatprep.subr.mxu0 0.0
      %1078 = vmatpush2.msra.mxu0 0.0
      %1079 = vmatprep.mubr.f32.mxu0 0.0
      %1080 = vmatmul.mubr.f32.gmra.mxu0 %v1013
      %v1081 = vpop.f32.mrf.mxu0
      %v1082 = vadd.f32 0.0, %v1081
      %v1083 = vpop.f32.mrf.mxu0
      %1084 = vdwg.mxu0
      %v1085 = vadd.f32 %v785, %v863
      %v1086 = vadd.f32 %v786, %v936
      %v1087 = vadd.f32 %v787, %v1009
      %v1088 = vadd.f32 %v788, %v1082
      %1089 = vst.msk [vmem:[#allocation4] sm:$0xff] %vm363, %v1085
      %1090 = vst.msk [vmem:[#allocation4 + $0x8] sm:$0xff] %vm363, %v1086
      %1091 = vst.msk [vmem:[#allocation4 + $0x10] sm:$0xff] %vm363, %v1087
      %1092 = vst.msk [vmem:[#allocation4 + $0x18] sm:$0xff] %vm363, %v1088
      %1093 = vst.msk [vmem:[#allocation2] sm:$0xff] %vm756, %v684
      %1094 = vst.msk [vmem:[#allocation2 + $0x8] sm:$0xff] %vm756, %v685
      %1095 = vst.msk [vmem:[#allocation2 + $0x10] sm:$0xff] %vm756, %v686
      %1096 = vst.msk [vmem:[#allocation2 + $0x18] sm:$0xff] %vm756, %v687
      // Predicated region
      $region37: #{causal_self_attention.4} parent=31 // pred_check
        %p1097 = pneg %p337
      $region38: #{causal_self_attention.4} parent=31 // pred_check_branch
        %1099 = sbr.rel (%p1097) target = $region40
      $region39: #{causal_self_attention.4} parent=31 // pred_region
        %v1100 = vld [vmem:[#allocation3] sm:$0xff]
        %v1101 = vld [vmem:[#allocation3 + $0x8] sm:$0xff]
        %v1102 = vld [vmem:[#allocation3 + $0x10] sm:$0xff]
        %v1103 = vld [vmem:[#allocation3 + $0x18] sm:$0xff]
        %v1104 = vrcp.pop %v1100
        %v1105 = vrcp.pop %v1101
        %v1106 = vrcp.pop %v1102
        %v1107 = vrcp.pop %v1103
        %v1108 = vld [vmem:[#allocation4] sm:$0xff]
        %v1109 = vld [vmem:[#allocation4 + $0x8] sm:$0xff]
        %v1110 = vld [vmem:[#allocation4 + $0x10] sm:$0xff]
        %v1111 = vld [vmem:[#allocation4 + $0x18] sm:$0xff]
        %1113 = vset.pattern.permute.xlu0 0
        %1114 = vperm.xlu0 %1113, %v1104
        %v1115 = vpop.permute.xlu0 %1114
        %1118 = vset.pattern.permute.xlu0 0
        %1119 = vperm.xlu0 %1118, %v1105
        %v1120 = vpop.permute.xlu0 %1119
        %1123 = vset.pattern.permute.xlu0 0
        %1124 = vperm.xlu0 %1123, %v1106
        %v1125 = vpop.permute.xlu0 %1124
        %1128 = vset.pattern.permute.xlu0 0
        %1129 = vperm.xlu0 %1128, %v1107
        %v1130 = vpop.permute.xlu0 %1129
        %v1132 = vmul.f32 %v1108, %v1115
        %v1133 = vmul.f32 %v1109, %v1120
        %v1134 = vmul.f32 %v1110, %v1125
        %v1135 = vmul.f32 %v1111, %v1130
        %1136 = vst.msk [vmem:[%s335] sm:$0xff] %vm363, %v1132
        %1137 = vst.msk [vmem:[%s335 + $0x8] sm:$0xff] %vm363, %v1133
        %1138 = vst.msk [vmem:[%s335 + $0x10] sm:$0xff] %vm363, %v1134
        %1139 = vst.msk [vmem:[%s335 + $0x18] sm:$0xff] %vm363, %v1135
      $region40: #{causal_self_attention.4} parent=31 // pred_fallthru
        _
      %s1140 = smul.u32 4, %s21
      %p1141 = scmp.lt.s32.totalorder %s20, 1
      %s1142 = scalar_select %p1141, %s20, 1
      %p1143 = scmp.lt.s32.totalorder %s1140, 3
      %s1144 = scalar_select %p1143, %s1140, 3
      %p1145 = scmp.lt.s32.totalorder %s22, 0
      %s1146 = scalar_select %p1145, %s22, 0
      %s1147 = sadd.s32 %s1146, %s1144
      %s1148 = smul.addr %s1142, 4
      %s1149 = sadd.s32 %s1147, %s1148
      %s1150 = smul.addr %s1149, 8
      %s1151 = scalar_lea.vmem %s3, %s1150
      // Predicated region
      $region41: #{causal_self_attention.4} parent=31 // pred_check
        %p1152 = pneg %p152
      $region42: #{causal_self_attention.4} parent=31 // pred_check_branch
        %1154 = sbr.rel (%p1152) target = $region44
      $region43: #{causal_self_attention.4} parent=31 // pred_region
        %s1155 = smul.u32 4, %s21
      $region44: #{causal_self_attention.4} parent=31 // pred_fallthru
        _
    $region32: #{causal_self_attention.4} parent=5 // pred_fallthru
      _
    %p1156 = scmp.le.s32.totalorder 2, %s9
    // Predicated region
    $region45: #{causal_self_attention.4} parent=5 // pred_check
      %p1157 = pneg %p1156
    $region46: #{causal_self_attention.4} parent=5 // pred_check_branch
      %1159 = sbr.rel (%p1157) target = $region48
    $region47: #{causal_self_attention.4} parent=5 // pred_region
      %s1160 = ssub.s32 %s9, 2
      // Predicated region
      $region49: #{causal_self_attention.4} parent=47 // pred_check
        %p1161 = pneg %p158
      $region50: #{causal_self_attention.4} parent=47 // pred_check_branch
        %1163 = sbr.rel (%p1161) target = $region52
      $region51: #{causal_self_attention.4} parent=47 // pred_region
        %s1164 = smul.u32 4, %s25
        %p1165 = scmp.lt.s32.totalorder %s24, 1
        %s1166 = scalar_select %p1165, %s24, 1
        %p1167 = scmp.lt.s32.totalorder %s1164, 3
        %s1168 = scalar_select %p1167, %s1164, 3
        %p1169 = scmp.lt.s32.totalorder %s26, 0
        %s1170 = scalar_select %p1169, %s26, 0
        %s1171 = sadd.s32 %s1170, %s1168
        %s1172 = smul.addr %s1166, 4
        %s1173 = sadd.s32 %s1171, %s1172
        %s1174 = smul.addr %s1173, 8
        %s1175 = scalar_lea.vmem %s3, %s1174
      $region52: #{causal_self_attention.4} parent=47 // pred_fallthru
        _
    $region48: #{causal_self_attention.4} parent=5 // pred_fallthru
      _
  $region6: #{causal_self_attention.4} parent=0 // loop_footer
    %s13 = sadd.s32 1, %s9
  $region7: #{causal_self_attention.4} parent=0 // loop_footer_branch
    %8 = sbr.rel target = $region3
  $region8: #{causal_self_attention.4} parent=0 // loop_exit
    _

</llo_original>
